<compile_context>
chip_gen: v6e
topology: v6e:2x2x1
jax: 0.10.0
libtpu: 0.0.40
codegen_flags: <defaults>
</compile_context>

<pallas_src>
import jax
import jax.numpy as jnp
from jax import lax
from jax.experimental import pallas as pl
from jax.experimental.pallas import tpu as pltpu


def lstm_tagger_kernel(sent_ref, emb_ref, wih_ref, whh_ref, b_ref, wtag_ref, btag_ref,
                       out_ref, emb_scratch, hs_scratch):
    """sent_ref:  SMEM (T,) int32       emb_ref:  (V, 1, E) f32
       wih_ref:   (E, 4*Hp) bf16        whh_ref:  (H, 4*Hp) bf16
       b_ref:     (1, 4*Hp) f32         wtag_ref: (Hp, C) f32     btag_ref: (1, C) f32
       out_ref:   (T, C) f32
       emb_scratch: (T, E) f32 VMEM     hs_scratch: (T, Hp) f32 VMEM
       Gate column order is [i|f|o|g]; Hp is the lane-padded hidden dim (padded lanes
       of W_ih/W_hh/b are zero, which keeps padded h/c lanes exactly zero)."""
    T = out_ref.shape[0]
    Hp = hs_scratch.shape[1]
    H = whh_ref.shape[0]

    # In-kernel embedding gather: dynamic index on the untiled leading axis of the table.
    for t in range(T):
        emb_scratch[pl.ds(t, 1), :] = emb_ref[sent_ref[t]]           # (1, E) row

    # Hoisted input projection: one (T,E)@(E,4Hp) bf16 MXU matmul, f32 accumulate + bias.
    pre_gates = (jnp.dot(emb_scratch[...].astype(jnp.bfloat16), wih_ref[...],
                         preferred_element_type=jnp.float32)
                 + b_ref[...])                                        # (T, 4*Hp) f32

    h = jnp.zeros((1, Hp), jnp.float32)
    c = jnp.zeros((1, Hp), jnp.float32)
    # Fully unrolled recurrence (T is static and small); W_hh streams from VMEM each step.
    for t in range(T):
        gates = pre_gates[t:t + 1, :] + jnp.dot(
            h[:, :H].astype(jnp.bfloat16), whh_ref[...],
            preferred_element_type=jnp.float32)                      # (1, 4*Hp) f32
        # Gate order [i|f|o|g]: one sigmoid over 3*Hp lanes, one tanh over Hp lanes.
        sig = jax.nn.sigmoid(gates[:, :3 * Hp])
        i_g = sig[:, 0 * Hp:1 * Hp]
        f_g = sig[:, 1 * Hp:2 * Hp]
        o_g = sig[:, 2 * Hp:3 * Hp]
        g_g = jnp.tanh(gates[:, 3 * Hp:4 * Hp])
        c = f_g * c + i_g * g_g
        h = o_g * jnp.tanh(c)
        hs_scratch[pl.ds(t, 1), :] = h                                # row store, off crit path

    # hidden2tag in f32; padded Hp rows of W_tag are zero, so padded lanes contribute 0.
    tag_space = (jnp.dot(hs_scratch[...], wtag_ref[...],
                         preferred_element_type=jnp.float32)
                 + btag_ref[...])                                     # (T, C) f32

    # log_softmax over the tag axis (dim=1), f32.
    m = jnp.max(tag_space, axis=-1, keepdims=True)
    lse = m + jnp.log(jnp.sum(jnp.exp(tag_space - m), axis=-1, keepdims=True))
    out_ref[...] = tag_space - lse


def _pack_gates(w, H, Hp):
    """(.., 4*H) PyTorch gate order [i|f|g|o] -> (.., 4*Hp) in order [i|f|o|g],
    each gate zero-padded to Hp columns so every gate block is 128-lane aligned."""
    lead = w.shape[:-1]
    w4 = w.reshape(lead + (4, H))
    w4 = w4[..., jnp.array([0, 1, 3, 2]), :]                          # i, f, o, g
    w4 = jnp.pad(w4, [(0, 0)] * len(lead) + [(0, 0), (0, Hp - H)])
    return w4.reshape(lead + (4 * Hp,))


def prepare_params(params):
    """One-time conversion of raw f32 PyTorch-layout params into kernel-ready params."""
    emb_table, w_ih_t, w_hh_t, b_gates, w_tag_t, b_tag = params
    H = w_hh_t.shape[0]
    Hp = ((H + 127) // 128) * 128                                     # lane-pad hidden dim

    emb3 = emb_table.astype(jnp.float32)[:, None, :]                  # (V, 1, E) f32
    w_ih_p = _pack_gates(w_ih_t, H, Hp).astype(jnp.bfloat16)          # (E, 4*Hp) bf16
    w_hh_p = _pack_gates(w_hh_t, H, Hp).astype(jnp.bfloat16)          # (H, 4*Hp) bf16, no K pad
    b_p = _pack_gates(b_gates, H, Hp).astype(jnp.float32)             # (1, 4*Hp) f32
    w_tag_p = jnp.pad(w_tag_t, ((0, Hp - H), (0, 0))).astype(jnp.float32)  # (Hp, C) f32
    b_tag_p = b_tag.astype(jnp.float32)                               # (1, C) f32
    return (emb3, w_ih_p, w_hh_p, b_p, w_tag_p, b_tag_p)


@jax.jit
def lstm_tagger_forward(sentence, kparams):
    """sentence: int32 (T,) word indices. Returns (T, tagset_size) log-probs."""
    emb3, w_ih_p, w_hh_p, b_p, w_tag_p, b_tag_p = kparams
    T = sentence.shape[0]
    E = emb3.shape[-1]
    Hp = w_tag_p.shape[0]
    C = w_tag_p.shape[1]

    return pl.pallas_call(
        lstm_tagger_kernel,
        out_shape=jax.ShapeDtypeStruct((T, C), jnp.float32),
        in_specs=[
            pl.BlockSpec(memory_space=pltpu.MemorySpace.SMEM),        # sentence indices
            pl.BlockSpec(memory_space=pltpu.MemorySpace.VMEM),        # embedding table
            pl.BlockSpec(memory_space=pltpu.MemorySpace.VMEM),        # W_ih
            pl.BlockSpec(memory_space=pltpu.MemorySpace.VMEM),        # W_hh
            pl.BlockSpec(memory_space=pltpu.MemorySpace.VMEM),        # gate bias
            pl.BlockSpec(memory_space=pltpu.MemorySpace.VMEM),        # W_tag
            pl.BlockSpec(memory_space=pltpu.MemorySpace.VMEM),        # b_tag
        ],
        out_specs=pl.BlockSpec(memory_space=pltpu.MemorySpace.VMEM),
        scratch_shapes=[
            pltpu.VMEM((T, E), jnp.float32),                          # gathered embeddings
            pltpu.VMEM((T, Hp), jnp.float32),                         # per-step hidden states
        ],
    )(sentence, emb3, w_ih_p, w_hh_p, b_p, w_tag_p, b_tag_p)


def init_params(key, embedding_dim, hidden_dim, vocab_size, tagset_size):
    """Raw f32 params, PyTorch layout (weights stored transposed for x @ W convenience)."""
    k = jax.random.split(key, 7)
    s = 1.0 / jnp.sqrt(hidden_dim)
    emb_table = jax.random.normal(k[0], (vocab_size, embedding_dim), jnp.float32)
    w_ih_t = jax.random.uniform(k[1], (embedding_dim, 4 * hidden_dim), jnp.float32, -s, s)
    w_hh_t = jax.random.uniform(k[2], (hidden_dim, 4 * hidden_dim), jnp.float32, -s, s)
    b_ih = jax.random.uniform(k[3], (1, 4 * hidden_dim), jnp.float32, -s, s)
    b_hh = jax.random.uniform(k[4], (1, 4 * hidden_dim), jnp.float32, -s, s)
    b_gates = b_ih + b_hh
    w_tag_t = jax.random.uniform(k[5], (hidden_dim, tagset_size), jnp.float32, -s, s)
    b_tag = jax.random.uniform(k[6], (1, tagset_size), jnp.float32, -s, s)
    return (emb_table, w_ih_t, w_hh_t, b_gates, w_tag_t, b_tag)


def reference_forward(sentence, params):
    """Pure-JAX f32 reference of the PyTorch forward pass (gate order i, f, g, o)."""
    emb_table, w_ih_t, w_hh_t, b_gates, w_tag_t, b_tag = params
    H = w_hh_t.shape[0]
    embeds = jnp.take(emb_table, sentence, axis=0)

    def step(carry, x_t):
        h, c = carry
        gates = x_t[None, :] @ w_ih_t + h @ w_hh_t + b_gates
        i = jax.nn.sigmoid(gates[:, 0:H])
        f = jax.nn.sigmoid(gates[:, H:2 * H])
        g = jnp.tanh(gates[:, 2 * H:3 * H])
        o = jax.nn.sigmoid(gates[:, 3 * H:4 * H])
        c_new = f * c + i * g
        h_new = o * jnp.tanh(c_new)
        return (h_new, c_new), h_new[0]

    (_, _), hs = lax.scan(step, (jnp.zeros((1, H)), jnp.zeros((1, H))), embeds)
    tag_space = hs @ w_tag_t + b_tag
    return jax.nn.log_softmax(tag_space, axis=1)


if __name__ == "__main__":
    EMBEDDING_DIM = 32
    HIDDEN_DIM = 32
    VOCAB_SIZE = 20
    TAGSET_SIZE = 8
    SEQ_LEN = 8

    key = jax.random.PRNGKey(0)
    pkey, skey = jax.random.split(key)
    params = init_params(pkey, EMBEDDING_DIM, HIDDEN_DIM, VOCAB_SIZE, TAGSET_SIZE)
    kparams = prepare_params(params)        # one-time pad / reorder / bf16 cast
    sentence = jax.random.randint(skey, (SEQ_LEN,), 0, VOCAB_SIZE, dtype=jnp.int32)

    tag_scores = lstm_tagger_forward(sentence, kparams)
    jax.block_until_ready(tag_scores)

    ref = reference_forward(sentence, params)
    assert tag_scores.shape == (SEQ_LEN, TAGSET_SIZE)
    # bf16 MXU operands (f32 accumulate) => relaxed tolerance vs. the pure-f32 reference.
    assert jnp.allclose(tag_scores, ref, atol=5e-2, rtol=1e-2), \
        float(jnp.max(jnp.abs(tag_scores - ref)))

    print("KERNEL_OK")
</pallas_src>

<mosaic_0001>
module attributes {stable_mosaic.version = 11 : i64} {
  func.func @lstm_tagger_kernel(%arg0: memref<8xi32, #tpu.memory_space<smem>>, %arg1: memref<20x1x32xf32, #tpu.memory_space<vmem>>, %arg2: memref<32x512xbf16, #tpu.memory_space<vmem>>, %arg3: memref<32x512xbf16, #tpu.memory_space<vmem>>, %arg4: memref<1x512xf32, #tpu.memory_space<vmem>>, %arg5: memref<128x8xf32, #tpu.memory_space<vmem>>, %arg6: memref<1x8xf32, #tpu.memory_space<vmem>>, %arg7: memref<8x8xf32, #tpu.memory_space<vmem>>, %arg8: memref<8x32xf32, #tpu.memory_space<vmem>>, %arg9: memref<8x128xf32, #tpu.memory_space<vmem>>) attributes {dimension_semantics = [], scalar_prefetch = 0 : i64, scratch_operands = 2 : i64, tpu.core_type = #tpu.core_type<tc>} {
    %c0 = arith.constant 0 : index
    %0 = memref.load %arg0[%c0] : memref<8xi32, #tpu.memory_space<smem>>
    %1 = arith.index_cast %0 : i32 to index
    %c0_0 = arith.constant 0 : index
    %c0_1 = arith.constant 0 : index
    %2 = vector.load %arg1[%1, %c0_0, %c0_1] : memref<20x1x32xf32, #tpu.memory_space<vmem>>, vector<1x1x32xf32>
    %3 = vector.shape_cast %2 : vector<1x1x32xf32> to vector<1x32xf32>
    %c0_2 = arith.constant 0 : index
    %c0_3 = arith.constant 0 : index
    %4 = vector.load %arg8[%c0_2, %c0_3] : memref<8x32xf32, #tpu.memory_space<vmem>>, vector<1x32xf32>
    tpu.vector_store %arg8[%c0_2, %c0_3], %3 {strides = array<i32>} : memref<8x32xf32, #tpu.memory_space<vmem>>, vector<1x32xf32>,
    %c1 = arith.constant 1 : index
    %5 = memref.load %arg0[%c1] : memref<8xi32, #tpu.memory_space<smem>>
    %6 = arith.index_cast %5 : i32 to index
    %c0_4 = arith.constant 0 : index
    %c0_5 = arith.constant 0 : index
    %7 = vector.load %arg1[%6, %c0_4, %c0_5] : memref<20x1x32xf32, #tpu.memory_space<vmem>>, vector<1x1x32xf32>
    %8 = vector.shape_cast %7 : vector<1x1x32xf32> to vector<1x32xf32>
    %c1_6 = arith.constant 1 : index
    %c0_7 = arith.constant 0 : index
    %9 = vector.load %arg8[%c1_6, %c0_7] : memref<8x32xf32, #tpu.memory_space<vmem>>, vector<1x32xf32>
    tpu.vector_store %arg8[%c1_6, %c0_7], %8 {strides = array<i32>} : memref<8x32xf32, #tpu.memory_space<vmem>>, vector<1x32xf32>,
    %c2 = arith.constant 2 : index
    %10 = memref.load %arg0[%c2] : memref<8xi32, #tpu.memory_space<smem>>
    %11 = arith.index_cast %10 : i32 to index
    %c0_8 = arith.constant 0 : index
    %c0_9 = arith.constant 0 : index
    %12 = vector.load %arg1[%11, %c0_8, %c0_9] : memref<20x1x32xf32, #tpu.memory_space<vmem>>, vector<1x1x32xf32>
    %13 = vector.shape_cast %12 : vector<1x1x32xf32> to vector<1x32xf32>
    %c2_10 = arith.constant 2 : index
    %c0_11 = arith.constant 0 : index
    %14 = vector.load %arg8[%c2_10, %c0_11] : memref<8x32xf32, #tpu.memory_space<vmem>>, vector<1x32xf32>
    tpu.vector_store %arg8[%c2_10, %c0_11], %13 {strides = array<i32>} : memref<8x32xf32, #tpu.memory_space<vmem>>, vector<1x32xf32>,
    %c3 = arith.constant 3 : index
    %15 = memref.load %arg0[%c3] : memref<8xi32, #tpu.memory_space<smem>>
    %16 = arith.index_cast %15 : i32 to index
    %c0_12 = arith.constant 0 : index
    %c0_13 = arith.constant 0 : index
    %17 = vector.load %arg1[%16, %c0_12, %c0_13] : memref<20x1x32xf32, #tpu.memory_space<vmem>>, vector<1x1x32xf32>
    %18 = vector.shape_cast %17 : vector<1x1x32xf32> to vector<1x32xf32>
    %c3_14 = arith.constant 3 : index
    %c0_15 = arith.constant 0 : index
    %19 = vector.load %arg8[%c3_14, %c0_15] : memref<8x32xf32, #tpu.memory_space<vmem>>, vector<1x32xf32>
    tpu.vector_store %arg8[%c3_14, %c0_15], %18 {strides = array<i32>} : memref<8x32xf32, #tpu.memory_space<vmem>>, vector<1x32xf32>,
    %c4 = arith.constant 4 : index
    %20 = memref.load %arg0[%c4] : memref<8xi32, #tpu.memory_space<smem>>
    %21 = arith.index_cast %20 : i32 to index
    %c0_16 = arith.constant 0 : index
    %c0_17 = arith.constant 0 : index
    %22 = vector.load %arg1[%21, %c0_16, %c0_17] : memref<20x1x32xf32, #tpu.memory_space<vmem>>, vector<1x1x32xf32>
    %23 = vector.shape_cast %22 : vector<1x1x32xf32> to vector<1x32xf32>
    %c4_18 = arith.constant 4 : index
    %c0_19 = arith.constant 0 : index
    %24 = vector.load %arg8[%c4_18, %c0_19] : memref<8x32xf32, #tpu.memory_space<vmem>>, vector<1x32xf32>
    tpu.vector_store %arg8[%c4_18, %c0_19], %23 {strides = array<i32>} : memref<8x32xf32, #tpu.memory_space<vmem>>, vector<1x32xf32>,
    %c5 = arith.constant 5 : index
    %25 = memref.load %arg0[%c5] : memref<8xi32, #tpu.memory_space<smem>>
    %26 = arith.index_cast %25 : i32 to index
    %c0_20 = arith.constant 0 : index
    %c0_21 = arith.constant 0 : index
    %27 = vector.load %arg1[%26, %c0_20, %c0_21] : memref<20x1x32xf32, #tpu.memory_space<vmem>>, vector<1x1x32xf32>
    %28 = vector.shape_cast %27 : vector<1x1x32xf32> to vector<1x32xf32>
    %c5_22 = arith.constant 5 : index
    %c0_23 = arith.constant 0 : index
    %29 = vector.load %arg8[%c5_22, %c0_23] : memref<8x32xf32, #tpu.memory_space<vmem>>, vector<1x32xf32>
    tpu.vector_store %arg8[%c5_22, %c0_23], %28 {strides = array<i32>} : memref<8x32xf32, #tpu.memory_space<vmem>>, vector<1x32xf32>,
    %c6 = arith.constant 6 : index
    %30 = memref.load %arg0[%c6] : memref<8xi32, #tpu.memory_space<smem>>
    %31 = arith.index_cast %30 : i32 to index
    %c0_24 = arith.constant 0 : index
    %c0_25 = arith.constant 0 : index
    %32 = vector.load %arg1[%31, %c0_24, %c0_25] : memref<20x1x32xf32, #tpu.memory_space<vmem>>, vector<1x1x32xf32>
    %33 = vector.shape_cast %32 : vector<1x1x32xf32> to vector<1x32xf32>
    %c6_26 = arith.constant 6 : index
    %c0_27 = arith.constant 0 : index
    %34 = vector.load %arg8[%c6_26, %c0_27] : memref<8x32xf32, #tpu.memory_space<vmem>>, vector<1x32xf32>
    tpu.vector_store %arg8[%c6_26, %c0_27], %33 {strides = array<i32>} : memref<8x32xf32, #tpu.memory_space<vmem>>, vector<1x32xf32>,
    %c7 = arith.constant 7 : index
    %35 = memref.load %arg0[%c7] : memref<8xi32, #tpu.memory_space<smem>>
    %36 = arith.index_cast %35 : i32 to index
    %c0_28 = arith.constant 0 : index
    %c0_29 = arith.constant 0 : index
    %37 = vector.load %arg1[%36, %c0_28, %c0_29] : memref<20x1x32xf32, #tpu.memory_space<vmem>>, vector<1x1x32xf32>
    %38 = vector.shape_cast %37 : vector<1x1x32xf32> to vector<1x32xf32>
    %c7_30 = arith.constant 7 : index
    %c0_31 = arith.constant 0 : index
    %39 = vector.load %arg8[%c7_30, %c0_31] : memref<8x32xf32, #tpu.memory_space<vmem>>, vector<1x32xf32>
    tpu.vector_store %arg8[%c7_30, %c0_31], %38 {strides = array<i32>} : memref<8x32xf32, #tpu.memory_space<vmem>>, vector<1x32xf32>,
    %c0_32 = arith.constant 0 : index
    %c0_33 = arith.constant 0 : index
    %40 = vector.load %arg8[%c0_32, %c0_33] : memref<8x32xf32, #tpu.memory_space<vmem>>, vector<8x32xf32>
    %41 = arith.truncf %40 : vector<8x32xf32> to vector<8x32xbf16>
    %c0_34 = arith.constant 0 : index
    %c0_35 = arith.constant 0 : index
    %42 = vector.load %arg2[%c0_34, %c0_35] : memref<32x512xbf16, #tpu.memory_space<vmem>>, vector<32x512xbf16>
    %cst = arith.constant dense<0.000000e+00> : vector<8x512xf32>
    %43 = tpu.matmul %41, %42, %cst {dimension_numbers = #tpu.dot_dimension_numbers<[1], [0], [0], [1], [0, 0, 1, 1], [], []>} : vector<8x32xbf16>, vector<32x512xbf16>, vector<8x512xf32> -> vector<8x512xf32>
    %c0_36 = arith.constant 0 : index
    %c0_37 = arith.constant 0 : index
    %44 = vector.load %arg4[%c0_36, %c0_37] : memref<1x512xf32, #tpu.memory_space<vmem>>, vector<1x512xf32>
    %45 = vector.broadcast %44 : vector<1x512xf32> to vector<8x512xf32>
    %46 = arith.addf %43, %45 : vector<8x512xf32>
    %cst_38 = arith.constant 0.000000e+00 : f32
    %47 = vector.broadcast %cst_38 : f32 to vector<1x128xf32>
    %cst_39 = arith.constant 0.000000e+00 : f32
    %48 = vector.broadcast %cst_39 : f32 to vector<1x128xf32>
    %49 = vector.extract_strided_slice %46 {offsets = [0, 0], sizes = [1, 512], strides = [1, 1]} : vector<8x512xf32> to vector<1x512xf32>
    %50 = vector.extract_strided_slice %47 {offsets = [0, 0], sizes = [1, 32], strides = [1, 1]} : vector<1x128xf32> to vector<1x32xf32>
    %51 = arith.truncf %50 : vector<1x32xf32> to vector<1x32xbf16>
    %c0_40 = arith.constant 0 : index
    %c0_41 = arith.constant 0 : index
    %52 = vector.load %arg3[%c0_40, %c0_41] : memref<32x512xbf16, #tpu.memory_space<vmem>>, vector<32x512xbf16>
    %cst_42 = arith.constant dense<0.000000e+00> : vector<1x512xf32>
    %53 = tpu.matmul %51, %52, %cst_42 {dimension_numbers = #tpu.dot_dimension_numbers<[1], [0], [0], [1], [0, 0, 1, 1], [], []>} : vector<1x32xbf16>, vector<32x512xbf16>, vector<1x512xf32> -> vector<1x512xf32>
    %54 = arith.addf %49, %53 : vector<1x512xf32>
    %55 = vector.extract_strided_slice %54 {offsets = [0, 0], sizes = [1, 384], strides = [1, 1]} : vector<1x512xf32> to vector<1x384xf32>
    %56 = arith.negf %55 : vector<1x384xf32>
    %57 = math.exp %56 : vector<1x384xf32>
    %cst_43 = arith.constant 1.000000e+00 : f32
    %58 = vector.broadcast %cst_43 : f32 to vector<1x384xf32>
    %59 = arith.addf %58, %57 : vector<1x384xf32>
    %60 = arith.divf %58, %59 : vector<1x384xf32>
    %61 = vector.extract_strided_slice %60 {offsets = [0, 0], sizes = [1, 128], strides = [1, 1]} : vector<1x384xf32> to vector<1x128xf32>
    %62 = vector.extract_strided_slice %60 {offsets = [0, 128], sizes = [1, 128], strides = [1, 1]} : vector<1x384xf32> to vector<1x128xf32>
    %63 = vector.extract_strided_slice %60 {offsets = [0, 256], sizes = [1, 128], strides = [1, 1]} : vector<1x384xf32> to vector<1x128xf32>
    %64 = vector.extract_strided_slice %54 {offsets = [0, 384], sizes = [1, 128], strides = [1, 1]} : vector<1x512xf32> to vector<1x128xf32>
    %65 = math.tanh %64 : vector<1x128xf32>
    %66 = arith.mulf %62, %48 : vector<1x128xf32>
    %67 = arith.mulf %61, %65 : vector<1x128xf32>
    %68 = arith.addf %66, %67 : vector<1x128xf32>
    %69 = math.tanh %68 : vector<1x128xf32>
    %70 = arith.mulf %63, %69 : vector<1x128xf32>
    %c0_44 = arith.constant 0 : index
    %c0_45 = arith.constant 0 : index
    %71 = vector.load %arg9[%c0_44, %c0_45] : memref<8x128xf32, #tpu.memory_space<vmem>>, vector<1x128xf32>
    tpu.vector_store %arg9[%c0_44, %c0_45], %70 {strides = array<i32>} : memref<8x128xf32, #tpu.memory_space<vmem>>, vector<1x128xf32>,
    %72 = vector.extract_strided_slice %46 {offsets = [1, 0], sizes = [1, 512], strides = [1, 1]} : vector<8x512xf32> to vector<1x512xf32>
    %73 = vector.extract_strided_slice %70 {offsets = [0, 0], sizes = [1, 32], strides = [1, 1]} : vector<1x128xf32> to vector<1x32xf32>
    %74 = arith.truncf %73 : vector<1x32xf32> to vector<1x32xbf16>
    %c0_46 = arith.constant 0 : index
    %c0_47 = arith.constant 0 : index
    %75 = vector.load %arg3[%c0_46, %c0_47] : memref<32x512xbf16, #tpu.memory_space<vmem>>, vector<32x512xbf16>
    %cst_48 = arith.constant dense<0.000000e+00> : vector<1x512xf32>
    %76 = tpu.matmul %74, %75, %cst_48 {dimension_numbers = #tpu.dot_dimension_numbers<[1], [0], [0], [1], [0, 0, 1, 1], [], []>} : vector<1x32xbf16>, vector<32x512xbf16>, vector<1x512xf32> -> vector<1x512xf32>
    %77 = arith.addf %72, %76 : vector<1x512xf32>
    %78 = vector.extract_strided_slice %77 {offsets = [0, 0], sizes = [1, 384], strides = [1, 1]} : vector<1x512xf32> to vector<1x384xf32>
    %79 = arith.negf %78 : vector<1x384xf32>
    %80 = math.exp %79 : vector<1x384xf32>
    %cst_49 = arith.constant 1.000000e+00 : f32
    %81 = vector.broadcast %cst_49 : f32 to vector<1x384xf32>
    %82 = arith.addf %81, %80 : vector<1x384xf32>
    %83 = arith.divf %81, %82 : vector<1x384xf32>
    %84 = vector.extract_strided_slice %83 {offsets = [0, 0], sizes = [1, 128], strides = [1, 1]} : vector<1x384xf32> to vector<1x128xf32>
    %85 = vector.extract_strided_slice %83 {offsets = [0, 128], sizes = [1, 128], strides = [1, 1]} : vector<1x384xf32> to vector<1x128xf32>
    %86 = vector.extract_strided_slice %83 {offsets = [0, 256], sizes = [1, 128], strides = [1, 1]} : vector<1x384xf32> to vector<1x128xf32>
    %87 = vector.extract_strided_slice %77 {offsets = [0, 384], sizes = [1, 128], strides = [1, 1]} : vector<1x512xf32> to vector<1x128xf32>
    %88 = math.tanh %87 : vector<1x128xf32>
    %89 = arith.mulf %85, %68 : vector<1x128xf32>
    %90 = arith.mulf %84, %88 : vector<1x128xf32>
    %91 = arith.addf %89, %90 : vector<1x128xf32>
    %92 = math.tanh %91 : vector<1x128xf32>
    %93 = arith.mulf %86, %92 : vector<1x128xf32>
    %c1_50 = arith.constant 1 : index
    %c0_51 = arith.constant 0 : index
    %94 = vector.load %arg9[%c1_50, %c0_51] : memref<8x128xf32, #tpu.memory_space<vmem>>, vector<1x128xf32>
    tpu.vector_store %arg9[%c1_50, %c0_51], %93 {strides = array<i32>} : memref<8x128xf32, #tpu.memory_space<vmem>>, vector<1x128xf32>,
    %95 = vector.extract_strided_slice %46 {offsets = [2, 0], sizes = [1, 512], strides = [1, 1]} : vector<8x512xf32> to vector<1x512xf32>
    %96 = vector.extract_strided_slice %93 {offsets = [0, 0], sizes = [1, 32], strides = [1, 1]} : vector<1x128xf32> to vector<1x32xf32>
    %97 = arith.truncf %96 : vector<1x32xf32> to vector<1x32xbf16>
    %c0_52 = arith.constant 0 : index
    %c0_53 = arith.constant 0 : index
    %98 = vector.load %arg3[%c0_52, %c0_53] : memref<32x512xbf16, #tpu.memory_space<vmem>>, vector<32x512xbf16>
    %cst_54 = arith.constant dense<0.000000e+00> : vector<1x512xf32>
    %99 = tpu.matmul %97, %98, %cst_54 {dimension_numbers = #tpu.dot_dimension_numbers<[1], [0], [0], [1], [0, 0, 1, 1], [], []>} : vector<1x32xbf16>, vector<32x512xbf16>, vector<1x512xf32> -> vector<1x512xf32>
    %100 = arith.addf %95, %99 : vector<1x512xf32>
    %101 = vector.extract_strided_slice %100 {offsets = [0, 0], sizes = [1, 384], strides = [1, 1]} : vector<1x512xf32> to vector<1x384xf32>
    %102 = arith.negf %101 : vector<1x384xf32>
    %103 = math.exp %102 : vector<1x384xf32>
    %cst_55 = arith.constant 1.000000e+00 : f32
    %104 = vector.broadcast %cst_55 : f32 to vector<1x384xf32>
    %105 = arith.addf %104, %103 : vector<1x384xf32>
    %106 = arith.divf %104, %105 : vector<1x384xf32>
    %107 = vector.extract_strided_slice %106 {offsets = [0, 0], sizes = [1, 128], strides = [1, 1]} : vector<1x384xf32> to vector<1x128xf32>
    %108 = vector.extract_strided_slice %106 {offsets = [0, 128], sizes = [1, 128], strides = [1, 1]} : vector<1x384xf32> to vector<1x128xf32>
    %109 = vector.extract_strided_slice %106 {offsets = [0, 256], sizes = [1, 128], strides = [1, 1]} : vector<1x384xf32> to vector<1x128xf32>
    %110 = vector.extract_strided_slice %100 {offsets = [0, 384], sizes = [1, 128], strides = [1, 1]} : vector<1x512xf32> to vector<1x128xf32>
    %111 = math.tanh %110 : vector<1x128xf32>
    %112 = arith.mulf %108, %91 : vector<1x128xf32>
    %113 = arith.mulf %107, %111 : vector<1x128xf32>
    %114 = arith.addf %112, %113 : vector<1x128xf32>
    %115 = math.tanh %114 : vector<1x128xf32>
    %116 = arith.mulf %109, %115 : vector<1x128xf32>
    %c2_56 = arith.constant 2 : index
    %c0_57 = arith.constant 0 : index
    %117 = vector.load %arg9[%c2_56, %c0_57] : memref<8x128xf32, #tpu.memory_space<vmem>>, vector<1x128xf32>
    tpu.vector_store %arg9[%c2_56, %c0_57], %116 {strides = array<i32>} : memref<8x128xf32, #tpu.memory_space<vmem>>, vector<1x128xf32>,
    %118 = vector.extract_strided_slice %46 {offsets = [3, 0], sizes = [1, 512], strides = [1, 1]} : vector<8x512xf32> to vector<1x512xf32>
    %119 = vector.extract_strided_slice %116 {offsets = [0, 0], sizes = [1, 32], strides = [1, 1]} : vector<1x128xf32> to vector<1x32xf32>
    %120 = arith.truncf %119 : vector<1x32xf32> to vector<1x32xbf16>
    %c0_58 = arith.constant 0 : index
    %c0_59 = arith.constant 0 : index
    %121 = vector.load %arg3[%c0_58, %c0_59] : memref<32x512xbf16, #tpu.memory_space<vmem>>, vector<32x512xbf16>
    %cst_60 = arith.constant dense<0.000000e+00> : vector<1x512xf32>
    %122 = tpu.matmul %120, %121, %cst_60 {dimension_numbers = #tpu.dot_dimension_numbers<[1], [0], [0], [1], [0, 0, 1, 1], [], []>} : vector<1x32xbf16>, vector<32x512xbf16>, vector<1x512xf32> -> vector<1x512xf32>
    %123 = arith.addf %118, %122 : vector<1x512xf32>
    %124 = vector.extract_strided_slice %123 {offsets = [0, 0], sizes = [1, 384], strides = [1, 1]} : vector<1x512xf32> to vector<1x384xf32>
    %125 = arith.negf %124 : vector<1x384xf32>
    %126 = math.exp %125 : vector<1x384xf32>
    %cst_61 = arith.constant 1.000000e+00 : f32
    %127 = vector.broadcast %cst_61 : f32 to vector<1x384xf32>
    %128 = arith.addf %127, %126 : vector<1x384xf32>
    %129 = arith.divf %127, %128 : vector<1x384xf32>
    %130 = vector.extract_strided_slice %129 {offsets = [0, 0], sizes = [1, 128], strides = [1, 1]} : vector<1x384xf32> to vector<1x128xf32>
    %131 = vector.extract_strided_slice %129 {offsets = [0, 128], sizes = [1, 128], strides = [1, 1]} : vector<1x384xf32> to vector<1x128xf32>
    %132 = vector.extract_strided_slice %129 {offsets = [0, 256], sizes = [1, 128], strides = [1, 1]} : vector<1x384xf32> to vector<1x128xf32>
    %133 = vector.extract_strided_slice %123 {offsets = [0, 384], sizes = [1, 128], strides = [1, 1]} : vector<1x512xf32> to vector<1x128xf32>
    %134 = math.tanh %133 : vector<1x128xf32>
    %135 = arith.mulf %131, %114 : vector<1x128xf32>
    %136 = arith.mulf %130, %134 : vector<1x128xf32>
    %137 = arith.addf %135, %136 : vector<1x128xf32>
    %138 = math.tanh %137 : vector<1x128xf32>
    %139 = arith.mulf %132, %138 : vector<1x128xf32>
    %c3_62 = arith.constant 3 : index
    %c0_63 = arith.constant 0 : index
    %140 = vector.load %arg9[%c3_62, %c0_63] : memref<8x128xf32, #tpu.memory_space<vmem>>, vector<1x128xf32>
    tpu.vector_store %arg9[%c3_62, %c0_63], %139 {strides = array<i32>} : memref<8x128xf32, #tpu.memory_space<vmem>>, vector<1x128xf32>,
    %141 = vector.extract_strided_slice %46 {offsets = [4, 0], sizes = [1, 512], strides = [1, 1]} : vector<8x512xf32> to vector<1x512xf32>
    %142 = vector.extract_strided_slice %139 {offsets = [0, 0], sizes = [1, 32], strides = [1, 1]} : vector<1x128xf32> to vector<1x32xf32>
    %143 = arith.truncf %142 : vector<1x32xf32> to vector<1x32xbf16>
    %c0_64 = arith.constant 0 : index
    %c0_65 = arith.constant 0 : index
    %144 = vector.load %arg3[%c0_64, %c0_65] : memref<32x512xbf16, #tpu.memory_space<vmem>>, vector<32x512xbf16>
    %cst_66 = arith.constant dense<0.000000e+00> : vector<1x512xf32>
    %145 = tpu.matmul %143, %144, %cst_66 {dimension_numbers = #tpu.dot_dimension_numbers<[1], [0], [0], [1], [0, 0, 1, 1], [], []>} : vector<1x32xbf16>, vector<32x512xbf16>, vector<1x512xf32> -> vector<1x512xf32>
    %146 = arith.addf %141, %145 : vector<1x512xf32>
    %147 = vector.extract_strided_slice %146 {offsets = [0, 0], sizes = [1, 384], strides = [1, 1]} : vector<1x512xf32> to vector<1x384xf32>
    %148 = arith.negf %147 : vector<1x384xf32>
    %149 = math.exp %148 : vector<1x384xf32>
    %cst_67 = arith.constant 1.000000e+00 : f32
    %150 = vector.broadcast %cst_67 : f32 to vector<1x384xf32>
    %151 = arith.addf %150, %149 : vector<1x384xf32>
    %152 = arith.divf %150, %151 : vector<1x384xf32>
    %153 = vector.extract_strided_slice %152 {offsets = [0, 0], sizes = [1, 128], strides = [1, 1]} : vector<1x384xf32> to vector<1x128xf32>
    %154 = vector.extract_strided_slice %152 {offsets = [0, 128], sizes = [1, 128], strides = [1, 1]} : vector<1x384xf32> to vector<1x128xf32>
    %155 = vector.extract_strided_slice %152 {offsets = [0, 256], sizes = [1, 128], strides = [1, 1]} : vector<1x384xf32> to vector<1x128xf32>
    %156 = vector.extract_strided_slice %146 {offsets = [0, 384], sizes = [1, 128], strides = [1, 1]} : vector<1x512xf32> to vector<1x128xf32>
    %157 = math.tanh %156 : vector<1x128xf32>
    %158 = arith.mulf %154, %137 : vector<1x128xf32>
    %159 = arith.mulf %153, %157 : vector<1x128xf32>
    %160 = arith.addf %158, %159 : vector<1x128xf32>
    %161 = math.tanh %160 : vector<1x128xf32>
    %162 = arith.mulf %155, %161 : vector<1x128xf32>
    %c4_68 = arith.constant 4 : index
    %c0_69 = arith.constant 0 : index
    %163 = vector.load %arg9[%c4_68, %c0_69] : memref<8x128xf32, #tpu.memory_space<vmem>>, vector<1x128xf32>
    tpu.vector_store %arg9[%c4_68, %c0_69], %162 {strides = array<i32>} : memref<8x128xf32, #tpu.memory_space<vmem>>, vector<1x128xf32>,
    %164 = vector.extract_strided_slice %46 {offsets = [5, 0], sizes = [1, 512], strides = [1, 1]} : vector<8x512xf32> to vector<1x512xf32>
    %165 = vector.extract_strided_slice %162 {offsets = [0, 0], sizes = [1, 32], strides = [1, 1]} : vector<1x128xf32> to vector<1x32xf32>
    %166 = arith.truncf %165 : vector<1x32xf32> to vector<1x32xbf16>
    %c0_70 = arith.constant 0 : index
    %c0_71 = arith.constant 0 : index
    %167 = vector.load %arg3[%c0_70, %c0_71] : memref<32x512xbf16, #tpu.memory_space<vmem>>, vector<32x512xbf16>
    %cst_72 = arith.constant dense<0.000000e+00> : vector<1x512xf32>
    %168 = tpu.matmul %166, %167, %cst_72 {dimension_numbers = #tpu.dot_dimension_numbers<[1], [0], [0], [1], [0, 0, 1, 1], [], []>} : vector<1x32xbf16>, vector<32x512xbf16>, vector<1x512xf32> -> vector<1x512xf32>
    %169 = arith.addf %164, %168 : vector<1x512xf32>
    %170 = vector.extract_strided_slice %169 {offsets = [0, 0], sizes = [1, 384], strides = [1, 1]} : vector<1x512xf32> to vector<1x384xf32>
    %171 = arith.negf %170 : vector<1x384xf32>
    %172 = math.exp %171 : vector<1x384xf32>
    %cst_73 = arith.constant 1.000000e+00 : f32
    %173 = vector.broadcast %cst_73 : f32 to vector<1x384xf32>
    %174 = arith.addf %173, %172 : vector<1x384xf32>
    %175 = arith.divf %173, %174 : vector<1x384xf32>
    %176 = vector.extract_strided_slice %175 {offsets = [0, 0], sizes = [1, 128], strides = [1, 1]} : vector<1x384xf32> to vector<1x128xf32>
    %177 = vector.extract_strided_slice %175 {offsets = [0, 128], sizes = [1, 128], strides = [1, 1]} : vector<1x384xf32> to vector<1x128xf32>
    %178 = vector.extract_strided_slice %175 {offsets = [0, 256], sizes = [1, 128], strides = [1, 1]} : vector<1x384xf32> to vector<1x128xf32>
    %179 = vector.extract_strided_slice %169 {offsets = [0, 384], sizes = [1, 128], strides = [1, 1]} : vector<1x512xf32> to vector<1x128xf32>
    %180 = math.tanh %179 : vector<1x128xf32>
    %181 = arith.mulf %177, %160 : vector<1x128xf32>
    %182 = arith.mulf %176, %180 : vector<1x128xf32>
    %183 = arith.addf %181, %182 : vector<1x128xf32>
    %184 = math.tanh %183 : vector<1x128xf32>
    %185 = arith.mulf %178, %184 : vector<1x128xf32>
    %c5_74 = arith.constant 5 : index
    %c0_75 = arith.constant 0 : index
    %186 = vector.load %arg9[%c5_74, %c0_75] : memref<8x128xf32, #tpu.memory_space<vmem>>, vector<1x128xf32>
    tpu.vector_store %arg9[%c5_74, %c0_75], %185 {strides = array<i32>} : memref<8x128xf32, #tpu.memory_space<vmem>>, vector<1x128xf32>,
    %187 = vector.extract_strided_slice %46 {offsets = [6, 0], sizes = [1, 512], strides = [1, 1]} : vector<8x512xf32> to vector<1x512xf32>
    %188 = vector.extract_strided_slice %185 {offsets = [0, 0], sizes = [1, 32], strides = [1, 1]} : vector<1x128xf32> to vector<1x32xf32>
    %189 = arith.truncf %188 : vector<1x32xf32> to vector<1x32xbf16>
    %c0_76 = arith.constant 0 : index
    %c0_77 = arith.constant 0 : index
    %190 = vector.load %arg3[%c0_76, %c0_77] : memref<32x512xbf16, #tpu.memory_space<vmem>>, vector<32x512xbf16>
    %cst_78 = arith.constant dense<0.000000e+00> : vector<1x512xf32>
    %191 = tpu.matmul %189, %190, %cst_78 {dimension_numbers = #tpu.dot_dimension_numbers<[1], [0], [0], [1], [0, 0, 1, 1], [], []>} : vector<1x32xbf16>, vector<32x512xbf16>, vector<1x512xf32> -> vector<1x512xf32>
    %192 = arith.addf %187, %191 : vector<1x512xf32>
    %193 = vector.extract_strided_slice %192 {offsets = [0, 0], sizes = [1, 384], strides = [1, 1]} : vector<1x512xf32> to vector<1x384xf32>
    %194 = arith.negf %193 : vector<1x384xf32>
    %195 = math.exp %194 : vector<1x384xf32>
    %cst_79 = arith.constant 1.000000e+00 : f32
    %196 = vector.broadcast %cst_79 : f32 to vector<1x384xf32>
    %197 = arith.addf %196, %195 : vector<1x384xf32>
    %198 = arith.divf %196, %197 : vector<1x384xf32>
    %199 = vector.extract_strided_slice %198 {offsets = [0, 0], sizes = [1, 128], strides = [1, 1]} : vector<1x384xf32> to vector<1x128xf32>
    %200 = vector.extract_strided_slice %198 {offsets = [0, 128], sizes = [1, 128], strides = [1, 1]} : vector<1x384xf32> to vector<1x128xf32>
    %201 = vector.extract_strided_slice %198 {offsets = [0, 256], sizes = [1, 128], strides = [1, 1]} : vector<1x384xf32> to vector<1x128xf32>
    %202 = vector.extract_strided_slice %192 {offsets = [0, 384], sizes = [1, 128], strides = [1, 1]} : vector<1x512xf32> to vector<1x128xf32>
    %203 = math.tanh %202 : vector<1x128xf32>
    %204 = arith.mulf %200, %183 : vector<1x128xf32>
    %205 = arith.mulf %199, %203 : vector<1x128xf32>
    %206 = arith.addf %204, %205 : vector<1x128xf32>
    %207 = math.tanh %206 : vector<1x128xf32>
    %208 = arith.mulf %201, %207 : vector<1x128xf32>
    %c6_80 = arith.constant 6 : index
    %c0_81 = arith.constant 0 : index
    %209 = vector.load %arg9[%c6_80, %c0_81] : memref<8x128xf32, #tpu.memory_space<vmem>>, vector<1x128xf32>
    tpu.vector_store %arg9[%c6_80, %c0_81], %208 {strides = array<i32>} : memref<8x128xf32, #tpu.memory_space<vmem>>, vector<1x128xf32>,
    %210 = vector.extract_strided_slice %46 {offsets = [7, 0], sizes = [1, 512], strides = [1, 1]} : vector<8x512xf32> to vector<1x512xf32>
    %211 = vector.extract_strided_slice %208 {offsets = [0, 0], sizes = [1, 32], strides = [1, 1]} : vector<1x128xf32> to vector<1x32xf32>
    %212 = arith.truncf %211 : vector<1x32xf32> to vector<1x32xbf16>
    %c0_82 = arith.constant 0 : index
    %c0_83 = arith.constant 0 : index
    %213 = vector.load %arg3[%c0_82, %c0_83] : memref<32x512xbf16, #tpu.memory_space<vmem>>, vector<32x512xbf16>
    %cst_84 = arith.constant dense<0.000000e+00> : vector<1x512xf32>
    %214 = tpu.matmul %212, %213, %cst_84 {dimension_numbers = #tpu.dot_dimension_numbers<[1], [0], [0], [1], [0, 0, 1, 1], [], []>} : vector<1x32xbf16>, vector<32x512xbf16>, vector<1x512xf32> -> vector<1x512xf32>
    %215 = arith.addf %210, %214 : vector<1x512xf32>
    %216 = vector.extract_strided_slice %215 {offsets = [0, 0], sizes = [1, 384], strides = [1, 1]} : vector<1x512xf32> to vector<1x384xf32>
    %217 = arith.negf %216 : vector<1x384xf32>
    %218 = math.exp %217 : vector<1x384xf32>
    %cst_85 = arith.constant 1.000000e+00 : f32
    %219 = vector.broadcast %cst_85 : f32 to vector<1x384xf32>
    %220 = arith.addf %219, %218 : vector<1x384xf32>
    %221 = arith.divf %219, %220 : vector<1x384xf32>
    %222 = vector.extract_strided_slice %221 {offsets = [0, 0], sizes = [1, 128], strides = [1, 1]} : vector<1x384xf32> to vector<1x128xf32>
    %223 = vector.extract_strided_slice %221 {offsets = [0, 128], sizes = [1, 128], strides = [1, 1]} : vector<1x384xf32> to vector<1x128xf32>
    %224 = vector.extract_strided_slice %221 {offsets = [0, 256], sizes = [1, 128], strides = [1, 1]} : vector<1x384xf32> to vector<1x128xf32>
    %225 = vector.extract_strided_slice %215 {offsets = [0, 384], sizes = [1, 128], strides = [1, 1]} : vector<1x512xf32> to vector<1x128xf32>
    %226 = math.tanh %225 : vector<1x128xf32>
    %227 = arith.mulf %223, %206 : vector<1x128xf32>
    %228 = arith.mulf %222, %226 : vector<1x128xf32>
    %229 = arith.addf %227, %228 : vector<1x128xf32>
    %230 = math.tanh %229 : vector<1x128xf32>
    %231 = arith.mulf %224, %230 : vector<1x128xf32>
    %c7_86 = arith.constant 7 : index
    %c0_87 = arith.constant 0 : index
    %232 = vector.load %arg9[%c7_86, %c0_87] : memref<8x128xf32, #tpu.memory_space<vmem>>, vector<1x128xf32>
    tpu.vector_store %arg9[%c7_86, %c0_87], %231 {strides = array<i32>} : memref<8x128xf32, #tpu.memory_space<vmem>>, vector<1x128xf32>,
    %c0_88 = arith.constant 0 : index
    %c0_89 = arith.constant 0 : index
    %233 = vector.load %arg9[%c0_88, %c0_89] : memref<8x128xf32, #tpu.memory_space<vmem>>, vector<8x128xf32>
    %c0_90 = arith.constant 0 : index
    %c0_91 = arith.constant 0 : index
    %234 = vector.load %arg5[%c0_90, %c0_91] : memref<128x8xf32, #tpu.memory_space<vmem>>, vector<128x8xf32>
    %cst_92 = arith.constant dense<0.000000e+00> : vector<8x8xf32>
    %235 = tpu.matmul %233, %234, %cst_92 {dimension_numbers = #tpu.dot_dimension_numbers<[1], [0], [0], [1], [0, 0, 1, 1], [], []>} : vector<8x128xf32>, vector<128x8xf32>, vector<8x8xf32> -> vector<8x8xf32>
    %c0_93 = arith.constant 0 : index
    %c0_94 = arith.constant 0 : index
    %236 = vector.load %arg6[%c0_93, %c0_94] : memref<1x8xf32, #tpu.memory_space<vmem>>, vector<1x8xf32>
    %237 = vector.broadcast %236 : vector<1x8xf32> to vector<8x8xf32>
    %238 = arith.addf %235, %237 : vector<8x8xf32>
    %cst_95 = arith.constant dense<0xFF800000> : vector<8xf32>
    %239 = vector.multi_reduction <maximumf>, %238, %cst_95 [1] : vector<8x8xf32> to vector<8xf32>
    %240 = vector.shape_cast %239 : vector<8xf32> to vector<8x1xf32>
    %241 = vector.broadcast %240 : vector<8x1xf32> to vector<8x8xf32>
    %242 = arith.subf %238, %241 : vector<8x8xf32>
    %243 = math.exp %242 : vector<8x8xf32>
    %cst_96 = arith.constant dense<0.000000e+00> : vector<8xf32>
    %244 = vector.multi_reduction <add>, %243, %cst_96 [1] : vector<8x8xf32> to vector<8xf32>
    %245 = vector.shape_cast %244 : vector<8xf32> to vector<8x1xf32>
    %246 = math.log %245 : vector<8x1xf32>
    %247 = arith.addf %240, %246 : vector<8x1xf32>
    %248 = vector.broadcast %247 : vector<8x1xf32> to vector<8x8xf32>
    %249 = arith.subf %238, %248 : vector<8x8xf32>
    %c0_97 = arith.constant 0 : index
    %c0_98 = arith.constant 0 : index
    %250 = vector.load %arg7[%c0_97, %c0_98] : memref<8x8xf32, #tpu.memory_space<vmem>>, vector<8x8xf32>
    tpu.vector_store %arg7[%c0_97, %c0_98], %249 {strides = array<i32>} : memref<8x8xf32, #tpu.memory_space<vmem>>, vector<8x8xf32>,
    return
  }
}

</mosaic_0001>

<llo_original>
// kernel: lstm_tagger_forward.1
$region0: #{lstm_tagger_forward.1}
  #allocation0 [shape = 'u32[]', space=smem, size = 0x4, offset = 0x4, fixed_abs, tag = 'smem constant byte address 0x4 - core index']
  #allocation1 [shape = 'u32[144,128]{1,0:T(1,128)}', space=vmem, size = 0x12000, scoped, tag = 'internal scratch']
  #allocation2 [shape = 'f32[8,32]{1,0:T(8,128)}', space=vmem, size = 0x1000, scoped, tag = 'scratch operand']
  #allocation3 [shape = 'f32[8,128]{1,0:T(8,128)}', space=vmem, size = 0x1000, scoped, tag = 'scratch operand']
  %s0 = inlined_call_operand.vmem [shape: s32[8], index: 0, kind: input, shape index: {}]
  %s1 = inlined_call_operand.hbm [shape: f32[20,1,32], index: 1, kind: input, shape index: {}]
  %s2 = inlined_call_operand.vmem [shape: bf16[32,512], index: 2, kind: input, shape index: {}]
  %s3 = inlined_call_operand.vmem [shape: bf16[32,512], index: 3, kind: input, shape index: {}]
  %s4 = inlined_call_operand.vmem [shape: f32[1,512], index: 4, kind: input, shape index: {}]
  %s5 = inlined_call_operand.vmem [shape: f32[128,8], index: 5, kind: input, shape index: {}]
  %s6 = inlined_call_operand.vmem [shape: f32[1,8], index: 6, kind: input, shape index: {}]
  %s7 = inlined_call_operand.hbm [shape: f32[8,8], index: 7, kind: output, shape index: {}]
  %s8 = sld [smem:[#allocation0]]
  $region46: #{lstm_tagger_forward.1} parent=0
    _
  %s10 = ssub.s32 1, %s8
  %s11 = scalar_select 0, %s10, %s8
  $region1: #{lstm_tagger_forward.1} parent=0
    #allocation4 [shape = 'u8[512]{0}', space=smem, size = 0x200, scoped, tag = 'input window, operand 0, single buffered']
    #allocation5 [shape = 's32[1]{0}', space=sflag, size = 0x4, scoped, tag = 'scoped memory for lstm_tagger_forward.1']
    #allocation6 [shape = 's32[1]{0}', space=sflag, size = 0x4, scoped, tag = 'scoped memory for lstm_tagger_forward.1']
    #allocation7 [shape = 's32[1]{0}', space=sflag, size = 0x4, scoped, tag = 'scoped memory for lstm_tagger_forward.1']
    #allocation8 [shape = 'u8[10240]{0}', space=vmem, size = 0x2800, scoped, tag = 'input window, operand 1, single buffered']
    #allocation9 [shape = 'u8[4096]{0}', space=vmem, size = 0x1000, scoped, tag = 'output window, operand 0, single buffered']
    %12 = vsyncpa [#allocation7], 0
    %13 = vsyncpa [#allocation5], 0
    %14 = vsyncpa [#allocation6], 0
    // Predicated region
    $region2: #{lstm_tagger_forward.1} parent=1 // pred_check
      _
    $region3: #{lstm_tagger_forward.1} parent=1 // pred_check_branch
      %16 = sbr.rel (0) target = $region5
    $region4: #{lstm_tagger_forward.1} parent=1 // pred_region
      %s18 = ssub.s32 16, 16
      %19 = vsyncadd [#allocation7], %s18
      %s21 = sshll.u32 %s0, 4
      %s22 = int_to_ptr.vmem [resolvable:$true] %s21
      %24 = dma.vmem_to_smem %s22, 16, [#allocation4], [#allocation7]
    $region5: #{lstm_tagger_forward.1} parent=1 // pred_fallthru
      _
    // Predicated region
    $region6: #{lstm_tagger_forward.1} parent=1 // pred_check
      _
    $region7: #{lstm_tagger_forward.1} parent=1 // pred_check_branch
      %26 = sbr.rel (0) target = $region9
    $region8: #{lstm_tagger_forward.1} parent=1 // pred_region
      %s28 = ssub.s32 320, 320
      %29 = vsyncadd [#allocation5], %s28
      %s30 = sshll.u32 [#allocation8], 4
      %s31 = int_to_ptr.vmem [resolvable:$true] %s30
      %36 = dma.hbm_to_vmem [thread:$0]  %s1, 320, %s31, [#allocation5], 16, 16, 1
    $region9: #{lstm_tagger_forward.1} parent=1 // pred_fallthru
      _
    // Predicated region
    $region10: #{lstm_tagger_forward.1} parent=1 // pred_check
      _
    $region11: #{lstm_tagger_forward.1} parent=1 // pred_check_branch
      %38 = sbr.rel (0) target = $region13
    $region12: #{lstm_tagger_forward.1} parent=1 // pred_region
      _
    $region13: #{lstm_tagger_forward.1} parent=1 // pred_fallthru
      _
    // Predicated region
    $region14: #{lstm_tagger_forward.1} parent=1 // pred_check
      _
    $region15: #{lstm_tagger_forward.1} parent=1 // pred_check_branch
      %40 = sbr.rel (0) target = $region17
    $region16: #{lstm_tagger_forward.1} parent=1 // pred_region
      _
    $region17: #{lstm_tagger_forward.1} parent=1 // pred_fallthru
      _
    // Predicated region
    $region18: #{lstm_tagger_forward.1} parent=1 // pred_check
      _
    $region19: #{lstm_tagger_forward.1} parent=1 // pred_check_branch
      %42 = sbr.rel (0) target = $region21
    $region20: #{lstm_tagger_forward.1} parent=1 // pred_region
      _
    $region21: #{lstm_tagger_forward.1} parent=1 // pred_fallthru
      _
    // Predicated region
    $region22: #{lstm_tagger_forward.1} parent=1 // pred_check
      _
    $region23: #{lstm_tagger_forward.1} parent=1 // pred_check_branch
      %44 = sbr.rel (0) target = $region25
    $region24: #{lstm_tagger_forward.1} parent=1 // pred_region
      _
    $region25: #{lstm_tagger_forward.1} parent=1 // pred_fallthru
      _
    // Predicated region
    $region26: #{lstm_tagger_forward.1} parent=1 // pred_check
      _
    $region27: #{lstm_tagger_forward.1} parent=1 // pred_check_branch
      %46 = sbr.rel (0) target = $region29
    $region28: #{lstm_tagger_forward.1} parent=1 // pred_region
      _
    $region29: #{lstm_tagger_forward.1} parent=1 // pred_fallthru
      _
    // Predicated region
    $region30: #{lstm_tagger_forward.1} parent=1 // pred_check
      _
    $region31: #{lstm_tagger_forward.1} parent=1 // pred_check_branch
      %48 = sbr.rel (0) target = $region33
    $region32: #{lstm_tagger_forward.1} parent=1 // pred_region
      %49 = dma.done [#allocation7], 16
    $region33: #{lstm_tagger_forward.1} parent=1 // pred_fallthru
      _
    // Predicated region
    $region34: #{lstm_tagger_forward.1} parent=1 // pred_check
      _
    $region35: #{lstm_tagger_forward.1} parent=1 // pred_check_branch
      %51 = sbr.rel (0) target = $region37
    $region36: #{lstm_tagger_forward.1} parent=1 // pred_region
      %52 = dma.done [#allocation5], 320
    $region37: #{lstm_tagger_forward.1} parent=1 // pred_fallthru
      _
    %53 = sfence
    %s55 = sld [smem:[#allocation4]]
    %s56 = scalar_lea.vmem [#allocation8], %s55
    %v57 = vld [vmem:[%s56] sm:$0x1]
    %vm58 = vcmask 253952
    %59 = vst.msk [vmem:[#allocation2] sm:$0x1] %vm58, %v57
    %s60 = sld [smem:[#allocation4 + $0x1]]
    %s61 = scalar_lea.vmem [#allocation8], %s60
    %v62 = vld [vmem:[%s61] sm:$0x1]
    %63 = vst.msk [vmem:[#allocation2 + $0x1] sm:$0x1] %vm58, %v62
    %s64 = sld [smem:[#allocation4 + $0x2]]
    %s65 = scalar_lea.vmem [#allocation8], %s64
    %v66 = vld [vmem:[%s65] sm:$0x1]
    %67 = vst.msk [vmem:[#allocation2 + $0x2] sm:$0x1] %vm58, %v66
    %s68 = sld [smem:[#allocation4 + $0x3]]
    %s69 = scalar_lea.vmem [#allocation8], %s68
    %v70 = vld [vmem:[%s69] sm:$0x1]
    %71 = vst.msk [vmem:[#allocation2 + $0x3] sm:$0x1] %vm58, %v70
    %s72 = sld [smem:[#allocation4 + $0x4]]
    %s73 = scalar_lea.vmem [#allocation8], %s72
    %v74 = vld [vmem:[%s73] sm:$0x1]
    %75 = vst.msk [vmem:[#allocation2 + $0x4] sm:$0x1] %vm58, %v74
    %s76 = sld [smem:[#allocation4 + $0x5]]
    %s77 = scalar_lea.vmem [#allocation8], %s76
    %v78 = vld [vmem:[%s77] sm:$0x1]
    %79 = vst.msk [vmem:[#allocation2 + $0x5] sm:$0x1] %vm58, %v78
    %s80 = sld [smem:[#allocation4 + $0x6]]
    %s81 = scalar_lea.vmem [#allocation8], %s80
    %v82 = vld [vmem:[%s81] sm:$0x1]
    %83 = vst.msk [vmem:[#allocation2 + $0x6] sm:$0x1] %vm58, %v82
    %s84 = sld [smem:[#allocation4 + $0x7]]
    %s85 = scalar_lea.vmem [#allocation8], %s84
    %v86 = vld [vmem:[%s85] sm:$0x1]
    %87 = vst.msk [vmem:[#allocation2 + $0x7] sm:$0x1] %vm58, %v86
    %v88 = vld [vmem:[#allocation2] sm:$0xff]
    %v89 = vpack.c.bf16 %v88, %v88
    %v90 = vld [vmem:[%s2] sm:$0xff]
    %v91 = vld [vmem:[%s2 + $0x8] sm:$0xff]
    %v92 = vld [vmem:[%s2 + $0x10] sm:$0xff]
    %v93 = vld [vmem:[%s2 + $0x18] sm:$0xff]
    %v94 = vld [vmem:[%s2 + $0x20] sm:$0xff]
    %v95 = vld [vmem:[%s2 + $0x28] sm:$0xff]
    %v96 = vld [vmem:[%s2 + $0x30] sm:$0xff]
    %v97 = vld [vmem:[%s2 + $0x38] sm:$0xff]
    %v98 = vld [vmem:[%s4] sm:$0xf]
    %v100 = vlaneseq
    %v101 = vshrl.u32 %v100, 7
    %v102 = vsub.s32 0, %v101
    %v103 = vrot.slane %v98, %v102
    %v104 = vlaneseq
    %v105 = vshrl.u32 %v104, 7
    %v106 = vsub.s32 1, %v105
    %v107 = vrot.slane %v98, %v106
    %v108 = vlaneseq
    %v109 = vshrl.u32 %v108, 7
    %v110 = vsub.s32 2, %v109
    %v111 = vrot.slane %v98, %v110
    %v112 = vlaneseq
    %v113 = vshrl.u32 %v112, 7
    %v114 = vsub.s32 3, %v113
    %v115 = vrot.slane %v98, %v114
    %v128 = vunpack.c.l.b16 %v90
    %v129 = vunpack.c.h.b16 %v90
    %v130 = vunpack.c.l.b16 %v91
    %v131 = vunpack.c.h.b16 %v91
    %v132 = vunpack.c.l.b16 %v92
    %v133 = vunpack.c.h.b16 %v92
    %v134 = vunpack.c.l.b16 %v93
    %v135 = vunpack.c.h.b16 %v93
    %v136 = vunpack.c.l.b16 %v94
    %v137 = vunpack.c.h.b16 %v94
    %v138 = vunpack.c.l.b16 %v95
    %v139 = vunpack.c.h.b16 %v95
    %v140 = vunpack.c.l.b16 %v96
    %v141 = vunpack.c.h.b16 %v96
    %v142 = vunpack.c.l.b16 %v97
    %v143 = vunpack.c.h.b16 %v97
    %v144 = vpack.c.b16 %v132, %v128
    %v145 = vpack.c.b16 %v133, %v129
    %v146 = vpack.c.b16 %v134, %v130
    %v147 = vpack.c.b16 %v135, %v131
    %v148 = vpack.c.b16 %v140, %v136
    %v149 = vpack.c.b16 %v141, %v137
    %v150 = vpack.c.b16 %v142, %v138
    %v151 = vpack.c.b16 %v143, %v139
    %vm160 = vcmask 261120
    %v162 = vsel %vm160, %v89, 0
    %164 = vmatprep.subr.bf16.mxu0 0
    %165 = vmatpush1.bf16.msra.mxu0 0
    %166 = vmatprep.subr.bf16.mxu0 0
    %167 = vmatpush1.bf16.msra.mxu0 0
    %168 = vmatprep.subr.bf16.mxu0 0
    %169 = vmatpush1.bf16.msra.mxu0 0
    %170 = vmatprep.subr.bf16.mxu0 0
    %171 = vmatpush1.bf16.msra.mxu0 0
    %172 = vmatprep.subr.bf16.mxu0 0
    %173 = vmatpush1.bf16.msra.mxu0 0
    %174 = vmatprep.subr.bf16.mxu0 0
    %175 = vmatpush1.bf16.msra.mxu0 0
    %176 = vmatprep.subr.bf16.mxu0 %v149
    %177 = vmatpush1.bf16.msra.mxu0 %v148
    %178 = vmatprep.subr.bf16.mxu0 %v145
    %179 = vmatpush1.bf16.msra.mxu0 %v144
    %180 = vmatprep.subr.bf16.mxu0 0
    %181 = vmatpush2.bf16.msra.mxu0 0
    %182 = vmatprep.subr.bf16.mxu0 0
    %183 = vmatpush2.bf16.msra.mxu0 0
    %184 = vmatprep.subr.bf16.mxu0 0
    %185 = vmatpush2.bf16.msra.mxu0 0
    %186 = vmatprep.subr.bf16.mxu0 0
    %187 = vmatpush2.bf16.msra.mxu0 0
    %188 = vmatprep.subr.bf16.mxu0 0
    %189 = vmatpush2.bf16.msra.mxu0 0
    %190 = vmatprep.subr.bf16.mxu0 0
    %191 = vmatpush2.bf16.msra.mxu0 0
    %192 = vmatprep.subr.bf16.mxu0 0
    %193 = vmatpush2.bf16.msra.mxu0 0
    %194 = vmatprep.subr.bf16.mxu0 0
    %195 = vmatpush2.bf16.msra.mxu0 0
    %196 = vmatprep.mubr.bf16.mxu0 0
    %197 = vmatmul.mubr.bf16.gmra.mxu0 %v162
    %v198 = vpop.f32.mrf.mxu0
    %v199 = vadd.f32 %v103, %v198
    %v200 = vpop.f32.mrf.mxu0
    %v201 = vadd.f32 %v107, %v200
    %v202 = vpop.f32.mrf.mxu0
    %v203 = vpop.f32.mrf.mxu0
    %204 = vdwg.mxu0
    %205 = vmatprep.subr.bf16.mxu0 0
    %206 = vmatpush1.bf16.msra.mxu0 0
    %207 = vmatprep.subr.bf16.mxu0 0
    %208 = vmatpush1.bf16.msra.mxu0 0
    %209 = vmatprep.subr.bf16.mxu0 0
    %210 = vmatpush1.bf16.msra.mxu0 0
    %211 = vmatprep.subr.bf16.mxu0 0
    %212 = vmatpush1.bf16.msra.mxu0 0
    %213 = vmatprep.subr.bf16.mxu0 0
    %214 = vmatpush1.bf16.msra.mxu0 0
    %215 = vmatprep.subr.bf16.mxu0 0
    %216 = vmatpush1.bf16.msra.mxu0 0
    %217 = vmatprep.subr.bf16.mxu0 %v151
    %218 = vmatpush1.bf16.msra.mxu0 %v150
    %219 = vmatprep.subr.bf16.mxu0 %v147
    %220 = vmatpush1.bf16.msra.mxu0 %v146
    %221 = vmatprep.subr.bf16.mxu0 0
    %222 = vmatpush2.bf16.msra.mxu0 0
    %223 = vmatprep.subr.bf16.mxu0 0
    %224 = vmatpush2.bf16.msra.mxu0 0
    %225 = vmatprep.subr.bf16.mxu0 0
    %226 = vmatpush2.bf16.msra.mxu0 0
    %227 = vmatprep.subr.bf16.mxu0 0
    %228 = vmatpush2.bf16.msra.mxu0 0
    %229 = vmatprep.subr.bf16.mxu0 0
    %230 = vmatpush2.bf16.msra.mxu0 0
    %231 = vmatprep.subr.bf16.mxu0 0
    %232 = vmatpush2.bf16.msra.mxu0 0
    %233 = vmatprep.subr.bf16.mxu0 0
    %234 = vmatpush2.bf16.msra.mxu0 0
    %235 = vmatprep.subr.bf16.mxu0 0
    %236 = vmatpush2.bf16.msra.mxu0 0
    %237 = vmatprep.mubr.bf16.mxu0 0
    %238 = vmatmul.mubr.bf16.gmra.mxu0 %v162
    %v239 = vpop.f32.mrf.mxu0
    %v240 = vadd.f32 %v111, %v239
    %v241 = vpop.f32.mrf.mxu0
    %v242 = vadd.f32 %v115, %v241
    %v243 = vpop.f32.mrf.mxu0
    %v244 = vpop.f32.mrf.mxu0
    %245 = vdwg.mxu0
    %v246 = vld [vmem:[%s3] sm:$0xff]
    %v247 = vld [vmem:[%s3 + $0x8] sm:$0xff]
    %v248 = vld [vmem:[%s3 + $0x10] sm:$0xff]
    %v249 = vld [vmem:[%s3 + $0x18] sm:$0xff]
    %v250 = vld [vmem:[%s3 + $0x20] sm:$0xff]
    %v251 = vld [vmem:[%s3 + $0x28] sm:$0xff]
    %v252 = vld [vmem:[%s3 + $0x30] sm:$0xff]
    %v253 = vld [vmem:[%s3 + $0x38] sm:$0xff]
    %v262 = vunpack.c.l.b16 %v246
    %v263 = vunpack.c.h.b16 %v246
    %v264 = vunpack.c.l.b16 %v247
    %v265 = vunpack.c.h.b16 %v247
    %v266 = vunpack.c.l.b16 %v248
    %v267 = vunpack.c.h.b16 %v248
    %v268 = vunpack.c.l.b16 %v249
    %v269 = vunpack.c.h.b16 %v249
    %v270 = vunpack.c.l.b16 %v250
    %v271 = vunpack.c.h.b16 %v250
    %v272 = vunpack.c.l.b16 %v251
    %v273 = vunpack.c.h.b16 %v251
    %v274 = vunpack.c.l.b16 %v252
    %v275 = vunpack.c.h.b16 %v252
    %v276 = vunpack.c.l.b16 %v253
    %v277 = vunpack.c.h.b16 %v253
    %v278 = vpack.c.b16 %v266, %v262
    %v279 = vpack.c.b16 %v267, %v263
    %v280 = vpack.c.b16 %v268, %v264
    %v281 = vpack.c.b16 %v269, %v265
    %v282 = vpack.c.b16 %v274, %v270
    %v283 = vpack.c.b16 %v275, %v271
    %v284 = vpack.c.b16 %v276, %v272
    %v285 = vpack.c.b16 %v277, %v273
    %v295 = vsel %vm160, 0, 0
    %297 = vmatprep.subr.bf16.mxu0 0
    %298 = vmatpush1.bf16.msra.mxu0 0
    %299 = vmatprep.subr.bf16.mxu0 0
    %300 = vmatpush1.bf16.msra.mxu0 0
    %301 = vmatprep.subr.bf16.mxu0 0
    %302 = vmatpush1.bf16.msra.mxu0 0
    %303 = vmatprep.subr.bf16.mxu0 0
    %304 = vmatpush1.bf16.msra.mxu0 0
    %305 = vmatprep.subr.bf16.mxu0 0
    %306 = vmatpush1.bf16.msra.mxu0 0
    %307 = vmatprep.subr.bf16.mxu0 0
    %308 = vmatpush1.bf16.msra.mxu0 0
    %309 = vmatprep.subr.bf16.mxu0 %v283
    %310 = vmatpush1.bf16.msra.mxu0 %v282
    %311 = vmatprep.subr.bf16.mxu0 %v279
    %312 = vmatpush1.bf16.msra.mxu0 %v278
    %313 = vmatprep.subr.bf16.mxu0 0
    %314 = vmatpush2.bf16.msra.mxu0 0
    %315 = vmatprep.subr.bf16.mxu0 0
    %316 = vmatpush2.bf16.msra.mxu0 0
    %317 = vmatprep.subr.bf16.mxu0 0
    %318 = vmatpush2.bf16.msra.mxu0 0
    %319 = vmatprep.subr.bf16.mxu0 0
    %320 = vmatpush2.bf16.msra.mxu0 0
    %321 = vmatprep.subr.bf16.mxu0 0
    %322 = vmatpush2.bf16.msra.mxu0 0
    %323 = vmatprep.subr.bf16.mxu0 0
    %324 = vmatpush2.bf16.msra.mxu0 0
    %325 = vmatprep.subr.bf16.mxu0 0
    %326 = vmatpush2.bf16.msra.mxu0 0
    %327 = vmatprep.subr.bf16.mxu0 0
    %328 = vmatpush2.bf16.msra.mxu0 0
    %329 = vmatprep.mubr.bf16.mxu0 0
    %330 = vmatmul.mubr.bf16.gmra.mxu0 %v295
    %v331 = vpop.f32.mrf.mxu0
    %v332 = vadd.f32 0.0, %v331
    %v333 = vpop.f32.mrf.mxu0
    %v334 = vadd.f32 0.0, %v333
    %v335 = vpop.f32.mrf.mxu0
    %v336 = vpop.f32.mrf.mxu0
    %337 = vdwg.mxu0
    %338 = vmatprep.subr.bf16.mxu0 0
    %339 = vmatpush1.bf16.msra.mxu0 0
    %340 = vmatprep.subr.bf16.mxu0 0
    %341 = vmatpush1.bf16.msra.mxu0 0
    %342 = vmatprep.subr.bf16.mxu0 0
    %343 = vmatpush1.bf16.msra.mxu0 0
    %344 = vmatprep.subr.bf16.mxu0 0
    %345 = vmatpush1.bf16.msra.mxu0 0
    %346 = vmatprep.subr.bf16.mxu0 0
    %347 = vmatpush1.bf16.msra.mxu0 0
    %348 = vmatprep.subr.bf16.mxu0 0
    %349 = vmatpush1.bf16.msra.mxu0 0
    %350 = vmatprep.subr.bf16.mxu0 %v285
    %351 = vmatpush1.bf16.msra.mxu0 %v284
    %352 = vmatprep.subr.bf16.mxu0 %v281
    %353 = vmatpush1.bf16.msra.mxu0 %v280
    %354 = vmatprep.subr.bf16.mxu0 0
    %355 = vmatpush2.bf16.msra.mxu0 0
    %356 = vmatprep.subr.bf16.mxu0 0
    %357 = vmatpush2.bf16.msra.mxu0 0
    %358 = vmatprep.subr.bf16.mxu0 0
    %359 = vmatpush2.bf16.msra.mxu0 0
    %360 = vmatprep.subr.bf16.mxu0 0
    %361 = vmatpush2.bf16.msra.mxu0 0
    %362 = vmatprep.subr.bf16.mxu0 0
    %363 = vmatpush2.bf16.msra.mxu0 0
    %364 = vmatprep.subr.bf16.mxu0 0
    %365 = vmatpush2.bf16.msra.mxu0 0
    %366 = vmatprep.subr.bf16.mxu0 0
    %367 = vmatpush2.bf16.msra.mxu0 0
    %368 = vmatprep.subr.bf16.mxu0 0
    %369 = vmatpush2.bf16.msra.mxu0 0
    %370 = vmatprep.mubr.bf16.mxu0 0
    %371 = vmatmul.mubr.bf16.gmra.mxu0 %v295
    %v372 = vpop.f32.mrf.mxu0
    %v373 = vadd.f32 0.0, %v372
    %v374 = vpop.f32.mrf.mxu0
    %v375 = vadd.f32 0.0, %v374
    %v376 = vpop.f32.mrf.mxu0
    %v377 = vpop.f32.mrf.mxu0
    %378 = vdwg.mxu0
    %v379 = vadd.f32 %v199, %v332
    %v380 = vadd.f32 %v201, %v334
    %v381 = vadd.f32 %v240, %v373
    %v382 = vadd.f32 %v242, %v375
    %v383 = vxor.u32 %v379, 2147483648
    %v384 = vxor.u32 %v380, 2147483648
    %v385 = vxor.u32 %v381, 2147483648
    %v386 = vmul.f32 %v383, 1.442695
    %v387 = vpow.pop %v386
    %v388 = vmul.f32 %v384, 1.442695
    %v389 = vpow.pop %v388
    %v390 = vmul.f32 %v385, 1.442695
    %v391 = vpow.pop %v390
    %v392 = vadd.f32 %v387, 1.0
    %v393 = vadd.f32 %v389, 1.0
    %v394 = vadd.f32 %v391, 1.0
    %v395 = vrcp.pop %v392
    %v396 = vmul.f32 1.0, %v395
    %v397 = vrcp.pop %v393
    %v398 = vmul.f32 1.0, %v397
    %v399 = vrcp.pop %v394
    %v400 = vmul.f32 1.0, %v399
    %v401 = vtanh.pop %v382
    %v402 = vmul.f32 %v398, 0.0
    %v403 = vmul.f32 %v396, %v401
    %v404 = vadd.f32 %v402, %v403
    %v405 = vtanh.pop %v404
    %v406 = vmul.f32 %v400, %v405
    %407 = vst [vmem:[#allocation3] sm:$0x1] %v406
    %v408 = vpack.c.bf16 %v406, %v406
    %v409 = vld [vmem:[%s3] sm:$0xff]
    %v410 = vld [vmem:[%s3 + $0x8] sm:$0xff]
    %v411 = vld [vmem:[%s3 + $0x10] sm:$0xff]
    %v412 = vld [vmem:[%s3 + $0x18] sm:$0xff]
    %v413 = vld [vmem:[%s3 + $0x20] sm:$0xff]
    %v414 = vld [vmem:[%s3 + $0x28] sm:$0xff]
    %v415 = vld [vmem:[%s3 + $0x30] sm:$0xff]
    %v416 = vld [vmem:[%s3 + $0x38] sm:$0xff]
    %v425 = vunpack.c.l.b16 %v409
    %v426 = vunpack.c.h.b16 %v409
    %v427 = vunpack.c.l.b16 %v410
    %v428 = vunpack.c.h.b16 %v410
    %v429 = vunpack.c.l.b16 %v411
    %v430 = vunpack.c.h.b16 %v411
    %v431 = vunpack.c.l.b16 %v412
    %v432 = vunpack.c.h.b16 %v412
    %v433 = vunpack.c.l.b16 %v413
    %v434 = vunpack.c.h.b16 %v413
    %v435 = vunpack.c.l.b16 %v414
    %v436 = vunpack.c.h.b16 %v414
    %v437 = vunpack.c.l.b16 %v415
    %v438 = vunpack.c.h.b16 %v415
    %v439 = vunpack.c.l.b16 %v416
    %v440 = vunpack.c.h.b16 %v416
    %v441 = vpack.c.b16 %v429, %v425
    %v442 = vpack.c.b16 %v430, %v426
    %v443 = vpack.c.b16 %v431, %v427
    %v444 = vpack.c.b16 %v432, %v428
    %v445 = vpack.c.b16 %v437, %v433
    %v446 = vpack.c.b16 %v438, %v434
    %v447 = vpack.c.b16 %v439, %v435
    %v448 = vpack.c.b16 %v440, %v436
    %v458 = vsel %vm160, %v408, 0
    %460 = vmatprep.subr.bf16.mxu0 0
    %461 = vmatpush1.bf16.msra.mxu0 0
    %462 = vmatprep.subr.bf16.mxu0 0
    %463 = vmatpush1.bf16.msra.mxu0 0
    %464 = vmatprep.subr.bf16.mxu0 0
    %465 = vmatpush1.bf16.msra.mxu0 0
    %466 = vmatprep.subr.bf16.mxu0 0
    %467 = vmatpush1.bf16.msra.mxu0 0
    %468 = vmatprep.subr.bf16.mxu0 0
    %469 = vmatpush1.bf16.msra.mxu0 0
    %470 = vmatprep.subr.bf16.mxu0 0
    %471 = vmatpush1.bf16.msra.mxu0 0
    %472 = vmatprep.subr.bf16.mxu0 %v446
    %473 = vmatpush1.bf16.msra.mxu0 %v445
    %474 = vmatprep.subr.bf16.mxu0 %v442
    %475 = vmatpush1.bf16.msra.mxu0 %v441
    %476 = vmatprep.subr.bf16.mxu0 0
    %477 = vmatpush2.bf16.msra.mxu0 0
    %478 = vmatprep.subr.bf16.mxu0 0
    %479 = vmatpush2.bf16.msra.mxu0 0
    %480 = vmatprep.subr.bf16.mxu0 0
    %481 = vmatpush2.bf16.msra.mxu0 0
    %482 = vmatprep.subr.bf16.mxu0 0
    %483 = vmatpush2.bf16.msra.mxu0 0
    %484 = vmatprep.subr.bf16.mxu0 0
    %485 = vmatpush2.bf16.msra.mxu0 0
    %486 = vmatprep.subr.bf16.mxu0 0
    %487 = vmatpush2.bf16.msra.mxu0 0
    %488 = vmatprep.subr.bf16.mxu0 0
    %489 = vmatpush2.bf16.msra.mxu0 0
    %490 = vmatprep.subr.bf16.mxu0 0
    %491 = vmatpush2.bf16.msra.mxu0 0
    %492 = vmatprep.mubr.bf16.mxu0 0
    %493 = vmatmul.mubr.bf16.gmra.mxu0 %v458
    %v494 = vpop.f32.mrf.mxu0
    %v495 = vadd.f32 0.0, %v494
    %v496 = vpop.f32.mrf.mxu0
    %v497 = vadd.f32 0.0, %v496
    %v498 = vpop.f32.mrf.mxu0
    %v499 = vpop.f32.mrf.mxu0
    %500 = vdwg.mxu0
    %501 = vmatprep.subr.bf16.mxu0 0
    %502 = vmatpush1.bf16.msra.mxu0 0
    %503 = vmatprep.subr.bf16.mxu0 0
    %504 = vmatpush1.bf16.msra.mxu0 0
    %505 = vmatprep.subr.bf16.mxu0 0
    %506 = vmatpush1.bf16.msra.mxu0 0
    %507 = vmatprep.subr.bf16.mxu0 0
    %508 = vmatpush1.bf16.msra.mxu0 0
    %509 = vmatprep.subr.bf16.mxu0 0
    %510 = vmatpush1.bf16.msra.mxu0 0
    %511 = vmatprep.subr.bf16.mxu0 0
    %512 = vmatpush1.bf16.msra.mxu0 0
    %513 = vmatprep.subr.bf16.mxu0 %v448
    %514 = vmatpush1.bf16.msra.mxu0 %v447
    %515 = vmatprep.subr.bf16.mxu0 %v444
    %516 = vmatpush1.bf16.msra.mxu0 %v443
    %517 = vmatprep.subr.bf16.mxu0 0
    %518 = vmatpush2.bf16.msra.mxu0 0
    %519 = vmatprep.subr.bf16.mxu0 0
    %520 = vmatpush2.bf16.msra.mxu0 0
    %521 = vmatprep.subr.bf16.mxu0 0
    %522 = vmatpush2.bf16.msra.mxu0 0
    %523 = vmatprep.subr.bf16.mxu0 0
    %524 = vmatpush2.bf16.msra.mxu0 0
    %525 = vmatprep.subr.bf16.mxu0 0
    %526 = vmatpush2.bf16.msra.mxu0 0
    %527 = vmatprep.subr.bf16.mxu0 0
    %528 = vmatpush2.bf16.msra.mxu0 0
    %529 = vmatprep.subr.bf16.mxu0 0
    %530 = vmatpush2.bf16.msra.mxu0 0
    %531 = vmatprep.subr.bf16.mxu0 0
    %532 = vmatpush2.bf16.msra.mxu0 0
    %533 = vmatprep.mubr.bf16.mxu0 0
    %534 = vmatmul.mubr.bf16.gmra.mxu0 %v458
    %v535 = vpop.f32.mrf.mxu0
    %v536 = vadd.f32 0.0, %v535
    %v537 = vpop.f32.mrf.mxu0
    %v538 = vadd.f32 0.0, %v537
    %v539 = vpop.f32.mrf.mxu0
    %v540 = vpop.f32.mrf.mxu0
    %541 = vdwg.mxu0
    %v546 = vrot.slane %v495, 7
    %v547 = vrot.slane %v497, 7
    %v548 = vrot.slane %v536, 7
    %v549 = vrot.slane %v538, 7
    %v554 = vadd.f32 %v199, %v546
    %v555 = vadd.f32 %v201, %v547
    %v556 = vadd.f32 %v240, %v548
    %v557 = vadd.f32 %v242, %v549
    %v558 = vxor.u32 %v554, 2147483648
    %v559 = vxor.u32 %v555, 2147483648
    %v560 = vxor.u32 %v556, 2147483648
    %v561 = vmul.f32 %v558, 1.442695
    %v562 = vpow.pop %v561
    %v563 = vmul.f32 %v559, 1.442695
    %v564 = vpow.pop %v563
    %v565 = vmul.f32 %v560, 1.442695
    %v566 = vpow.pop %v565
    %v567 = vadd.f32 %v562, 1.0
    %v568 = vadd.f32 %v564, 1.0
    %v569 = vadd.f32 %v566, 1.0
    %v570 = vrcp.pop %v567
    %v571 = vmul.f32 1.0, %v570
    %v572 = vrcp.pop %v568
    %v573 = vmul.f32 1.0, %v572
    %v574 = vrcp.pop %v569
    %v575 = vmul.f32 1.0, %v574
    %v576 = vtanh.pop %v557
    %v578 = vrot.slane %v404, 7
    %v580 = vmul.f32 %v573, %v578
    %v581 = vmul.f32 %v571, %v576
    %v582 = vadd.f32 %v580, %v581
    %v583 = vtanh.pop %v582
    %v584 = vmul.f32 %v575, %v583
    %585 = vst [vmem:[#allocation3] sm:$0x2] %v584
    %v586 = vpack.c.bf16 %v584, %v584
    %v587 = vld [vmem:[%s3] sm:$0xff]
    %v588 = vld [vmem:[%s3 + $0x8] sm:$0xff]
    %v589 = vld [vmem:[%s3 + $0x10] sm:$0xff]
    %v590 = vld [vmem:[%s3 + $0x18] sm:$0xff]
    %v591 = vld [vmem:[%s3 + $0x20] sm:$0xff]
    %v592 = vld [vmem:[%s3 + $0x28] sm:$0xff]
    %v593 = vld [vmem:[%s3 + $0x30] sm:$0xff]
    %v594 = vld [vmem:[%s3 + $0x38] sm:$0xff]
    %v596 = vshrl.u32 %v586, 16
    %v606 = vunpack.c.l.b16 %v587
    %v607 = vunpack.c.h.b16 %v587
    %v608 = vunpack.c.l.b16 %v588
    %v609 = vunpack.c.h.b16 %v588
    %v610 = vunpack.c.l.b16 %v589
    %v611 = vunpack.c.h.b16 %v589
    %v612 = vunpack.c.l.b16 %v590
    %v613 = vunpack.c.h.b16 %v590
    %v614 = vunpack.c.l.b16 %v591
    %v615 = vunpack.c.h.b16 %v591
    %v616 = vunpack.c.l.b16 %v592
    %v617 = vunpack.c.h.b16 %v592
    %v618 = vunpack.c.l.b16 %v593
    %v619 = vunpack.c.h.b16 %v593
    %v620 = vunpack.c.l.b16 %v594
    %v621 = vunpack.c.h.b16 %v594
    %v622 = vpack.c.b16 %v610, %v606
    %v623 = vpack.c.b16 %v611, %v607
    %v624 = vpack.c.b16 %v612, %v608
    %v625 = vpack.c.b16 %v613, %v609
    %v626 = vpack.c.b16 %v618, %v614
    %v627 = vpack.c.b16 %v619, %v615
    %v628 = vpack.c.b16 %v620, %v616
    %v629 = vpack.c.b16 %v621, %v617
    %v639 = vsel %vm160, %v596, 0
    %641 = vmatprep.subr.bf16.mxu0 0
    %642 = vmatpush1.bf16.msra.mxu0 0
    %643 = vmatprep.subr.bf16.mxu0 0
    %644 = vmatpush1.bf16.msra.mxu0 0
    %645 = vmatprep.subr.bf16.mxu0 0
    %646 = vmatpush1.bf16.msra.mxu0 0
    %647 = vmatprep.subr.bf16.mxu0 0
    %648 = vmatpush1.bf16.msra.mxu0 0
    %649 = vmatprep.subr.bf16.mxu0 0
    %650 = vmatpush1.bf16.msra.mxu0 0
    %651 = vmatprep.subr.bf16.mxu0 0
    %652 = vmatpush1.bf16.msra.mxu0 0
    %653 = vmatprep.subr.bf16.mxu0 %v627
    %654 = vmatpush1.bf16.msra.mxu0 %v626
    %655 = vmatprep.subr.bf16.mxu0 %v623
    %656 = vmatpush1.bf16.msra.mxu0 %v622
    %657 = vmatprep.subr.bf16.mxu0 0
    %658 = vmatpush2.bf16.msra.mxu0 0
    %659 = vmatprep.subr.bf16.mxu0 0
    %660 = vmatpush2.bf16.msra.mxu0 0
    %661 = vmatprep.subr.bf16.mxu0 0
    %662 = vmatpush2.bf16.msra.mxu0 0
    %663 = vmatprep.subr.bf16.mxu0 0
    %664 = vmatpush2.bf16.msra.mxu0 0
    %665 = vmatprep.subr.bf16.mxu0 0
    %666 = vmatpush2.bf16.msra.mxu0 0
    %667 = vmatprep.subr.bf16.mxu0 0
    %668 = vmatpush2.bf16.msra.mxu0 0
    %669 = vmatprep.subr.bf16.mxu0 0
    %670 = vmatpush2.bf16.msra.mxu0 0
    %671 = vmatprep.subr.bf16.mxu0 0
    %672 = vmatpush2.bf16.msra.mxu0 0
    %673 = vmatprep.mubr.bf16.mxu0 0
    %674 = vmatmul.mubr.bf16.gmra.mxu0 %v639
    %v675 = vpop.f32.mrf.mxu0
    %v676 = vadd.f32 0.0, %v675
    %v677 = vpop.f32.mrf.mxu0
    %v678 = vadd.f32 0.0, %v677
    %v679 = vpop.f32.mrf.mxu0
    %v680 = vpop.f32.mrf.mxu0
    %681 = vdwg.mxu0
    %682 = vmatprep.subr.bf16.mxu0 0
    %683 = vmatpush1.bf16.msra.mxu0 0
    %684 = vmatprep.subr.bf16.mxu0 0
    %685 = vmatpush1.bf16.msra.mxu0 0
    %686 = vmatprep.subr.bf16.mxu0 0
    %687 = vmatpush1.bf16.msra.mxu0 0
    %688 = vmatprep.subr.bf16.mxu0 0
    %689 = vmatpush1.bf16.msra.mxu0 0
    %690 = vmatprep.subr.bf16.mxu0 0
    %691 = vmatpush1.bf16.msra.mxu0 0
    %692 = vmatprep.subr.bf16.mxu0 0
    %693 = vmatpush1.bf16.msra.mxu0 0
    %694 = vmatprep.subr.bf16.mxu0 %v629
    %695 = vmatpush1.bf16.msra.mxu0 %v628
    %696 = vmatprep.subr.bf16.mxu0 %v625
    %697 = vmatpush1.bf16.msra.mxu0 %v624
    %698 = vmatprep.subr.bf16.mxu0 0
    %699 = vmatpush2.bf16.msra.mxu0 0
    %700 = vmatprep.subr.bf16.mxu0 0
    %701 = vmatpush2.bf16.msra.mxu0 0
    %702 = vmatprep.subr.bf16.mxu0 0
    %703 = vmatpush2.bf16.msra.mxu0 0
    %704 = vmatprep.subr.bf16.mxu0 0
    %705 = vmatpush2.bf16.msra.mxu0 0
    %706 = vmatprep.subr.bf16.mxu0 0
    %707 = vmatpush2.bf16.msra.mxu0 0
    %708 = vmatprep.subr.bf16.mxu0 0
    %709 = vmatpush2.bf16.msra.mxu0 0
    %710 = vmatprep.subr.bf16.mxu0 0
    %711 = vmatpush2.bf16.msra.mxu0 0
    %712 = vmatprep.subr.bf16.mxu0 0
    %713 = vmatpush2.bf16.msra.mxu0 0
    %714 = vmatprep.mubr.bf16.mxu0 0
    %715 = vmatmul.mubr.bf16.gmra.mxu0 %v639
    %v716 = vpop.f32.mrf.mxu0
    %v717 = vadd.f32 0.0, %v716
    %v718 = vpop.f32.mrf.mxu0
    %v719 = vadd.f32 0.0, %v718
    %v720 = vpop.f32.mrf.mxu0
    %v721 = vpop.f32.mrf.mxu0
    %722 = vdwg.mxu0
    %v727 = vrot.slane %v676, 6
    %v728 = vrot.slane %v678, 6
    %v729 = vrot.slane %v717, 6
    %v730 = vrot.slane %v719, 6
    %v735 = vadd.f32 %v199, %v727
    %v736 = vadd.f32 %v201, %v728
    %v737 = vadd.f32 %v240, %v729
    %v738 = vadd.f32 %v242, %v730
    %v739 = vxor.u32 %v735, 2147483648
    %v740 = vxor.u32 %v736, 2147483648
    %v741 = vxor.u32 %v737, 2147483648
    %v742 = vmul.f32 %v739, 1.442695
    %v743 = vpow.pop %v742
    %v744 = vmul.f32 %v740, 1.442695
    %v745 = vpow.pop %v744
    %v746 = vmul.f32 %v741, 1.442695
    %v747 = vpow.pop %v746
    %v748 = vadd.f32 %v743, 1.0
    %v749 = vadd.f32 %v745, 1.0
    %v750 = vadd.f32 %v747, 1.0
    %v751 = vrcp.pop %v748
    %v752 = vmul.f32 1.0, %v751
    %v753 = vrcp.pop %v749
    %v754 = vmul.f32 1.0, %v753
    %v755 = vrcp.pop %v750
    %v756 = vmul.f32 1.0, %v755
    %v757 = vtanh.pop %v738
    %v759 = vrot.slane %v582, 7
    %v761 = vmul.f32 %v754, %v759
    %v762 = vmul.f32 %v752, %v757
    %v763 = vadd.f32 %v761, %v762
    %v764 = vtanh.pop %v763
    %v765 = vmul.f32 %v756, %v764
    %766 = vst [vmem:[#allocation3] sm:$0x4] %v765
    %v767 = vpack.c.bf16 %v765, %v765
    %v768 = vld [vmem:[%s3] sm:$0xff]
    %v769 = vld [vmem:[%s3 + $0x8] sm:$0xff]
    %v770 = vld [vmem:[%s3 + $0x10] sm:$0xff]
    %v771 = vld [vmem:[%s3 + $0x18] sm:$0xff]
    %v772 = vld [vmem:[%s3 + $0x20] sm:$0xff]
    %v773 = vld [vmem:[%s3 + $0x28] sm:$0xff]
    %v774 = vld [vmem:[%s3 + $0x30] sm:$0xff]
    %v775 = vld [vmem:[%s3 + $0x38] sm:$0xff]
    %v777 = vrot.slane %v767, 1
    %v786 = vunpack.c.l.b16 %v768
    %v787 = vunpack.c.h.b16 %v768
    %v788 = vunpack.c.l.b16 %v769
    %v789 = vunpack.c.h.b16 %v769
    %v790 = vunpack.c.l.b16 %v770
    %v791 = vunpack.c.h.b16 %v770
    %v792 = vunpack.c.l.b16 %v771
    %v793 = vunpack.c.h.b16 %v771
    %v794 = vunpack.c.l.b16 %v772
    %v795 = vunpack.c.h.b16 %v772
    %v796 = vunpack.c.l.b16 %v773
    %v797 = vunpack.c.h.b16 %v773
    %v798 = vunpack.c.l.b16 %v774
    %v799 = vunpack.c.h.b16 %v774
    %v800 = vunpack.c.l.b16 %v775
    %v801 = vunpack.c.h.b16 %v775
    %v802 = vpack.c.b16 %v790, %v786
    %v803 = vpack.c.b16 %v791, %v787
    %v804 = vpack.c.b16 %v792, %v788
    %v805 = vpack.c.b16 %v793, %v789
    %v806 = vpack.c.b16 %v798, %v794
    %v807 = vpack.c.b16 %v799, %v795
    %v808 = vpack.c.b16 %v800, %v796
    %v809 = vpack.c.b16 %v801, %v797
    %v819 = vsel %vm160, %v777, 0
    %821 = vmatprep.subr.bf16.mxu0 0
    %822 = vmatpush1.bf16.msra.mxu0 0
    %823 = vmatprep.subr.bf16.mxu0 0
    %824 = vmatpush1.bf16.msra.mxu0 0
    %825 = vmatprep.subr.bf16.mxu0 0
    %826 = vmatpush1.bf16.msra.mxu0 0
    %827 = vmatprep.subr.bf16.mxu0 0
    %828 = vmatpush1.bf16.msra.mxu0 0
    %829 = vmatprep.subr.bf16.mxu0 0
    %830 = vmatpush1.bf16.msra.mxu0 0
    %831 = vmatprep.subr.bf16.mxu0 0
    %832 = vmatpush1.bf16.msra.mxu0 0
    %833 = vmatprep.subr.bf16.mxu0 %v807
    %834 = vmatpush1.bf16.msra.mxu0 %v806
    %835 = vmatprep.subr.bf16.mxu0 %v803
    %836 = vmatpush1.bf16.msra.mxu0 %v802
    %837 = vmatprep.subr.bf16.mxu0 0
    %838 = vmatpush2.bf16.msra.mxu0 0
    %839 = vmatprep.subr.bf16.mxu0 0
    %840 = vmatpush2.bf16.msra.mxu0 0
    %841 = vmatprep.subr.bf16.mxu0 0
    %842 = vmatpush2.bf16.msra.mxu0 0
    %843 = vmatprep.subr.bf16.mxu0 0
    %844 = vmatpush2.bf16.msra.mxu0 0
    %845 = vmatprep.subr.bf16.mxu0 0
    %846 = vmatpush2.bf16.msra.mxu0 0
    %847 = vmatprep.subr.bf16.mxu0 0
    %848 = vmatpush2.bf16.msra.mxu0 0
    %849 = vmatprep.subr.bf16.mxu0 0
    %850 = vmatpush2.bf16.msra.mxu0 0
    %851 = vmatprep.subr.bf16.mxu0 0
    %852 = vmatpush2.bf16.msra.mxu0 0
    %853 = vmatprep.mubr.bf16.mxu0 0
    %854 = vmatmul.mubr.bf16.gmra.mxu0 %v819
    %v855 = vpop.f32.mrf.mxu0
    %v856 = vadd.f32 0.0, %v855
    %v857 = vpop.f32.mrf.mxu0
    %v858 = vadd.f32 0.0, %v857
    %v859 = vpop.f32.mrf.mxu0
    %v860 = vpop.f32.mrf.mxu0
    %861 = vdwg.mxu0
    %862 = vmatprep.subr.bf16.mxu0 0
    %863 = vmatpush1.bf16.msra.mxu0 0
    %864 = vmatprep.subr.bf16.mxu0 0
    %865 = vmatpush1.bf16.msra.mxu0 0
    %866 = vmatprep.subr.bf16.mxu0 0
    %867 = vmatpush1.bf16.msra.mxu0 0
    %868 = vmatprep.subr.bf16.mxu0 0
    %869 = vmatpush1.bf16.msra.mxu0 0
    %870 = vmatprep.subr.bf16.mxu0 0
    %871 = vmatpush1.bf16.msra.mxu0 0
    %872 = vmatprep.subr.bf16.mxu0 0
    %873 = vmatpush1.bf16.msra.mxu0 0
    %874 = vmatprep.subr.bf16.mxu0 %v809
    %875 = vmatpush1.bf16.msra.mxu0 %v808
    %876 = vmatprep.subr.bf16.mxu0 %v805
    %877 = vmatpush1.bf16.msra.mxu0 %v804
    %878 = vmatprep.subr.bf16.mxu0 0
    %879 = vmatpush2.bf16.msra.mxu0 0
    %880 = vmatprep.subr.bf16.mxu0 0
    %881 = vmatpush2.bf16.msra.mxu0 0
    %882 = vmatprep.subr.bf16.mxu0 0
    %883 = vmatpush2.bf16.msra.mxu0 0
    %884 = vmatprep.subr.bf16.mxu0 0
    %885 = vmatpush2.bf16.msra.mxu0 0
    %886 = vmatprep.subr.bf16.mxu0 0
    %887 = vmatpush2.bf16.msra.mxu0 0
    %888 = vmatprep.subr.bf16.mxu0 0
    %889 = vmatpush2.bf16.msra.mxu0 0
    %890 = vmatprep.subr.bf16.mxu0 0
    %891 = vmatpush2.bf16.msra.mxu0 0
    %892 = vmatprep.subr.bf16.mxu0 0
    %893 = vmatpush2.bf16.msra.mxu0 0
    %894 = vmatprep.mubr.bf16.mxu0 0
    %895 = vmatmul.mubr.bf16.gmra.mxu0 %v819
    %v896 = vpop.f32.mrf.mxu0
    %v897 = vadd.f32 0.0, %v896
    %v898 = vpop.f32.mrf.mxu0
    %v899 = vadd.f32 0.0, %v898
    %v900 = vpop.f32.mrf.mxu0
    %v901 = vpop.f32.mrf.mxu0
    %902 = vdwg.mxu0
    %v907 = vrot.slane %v856, 5
    %v908 = vrot.slane %v858, 5
    %v909 = vrot.slane %v897, 5
    %v910 = vrot.slane %v899, 5
    %v915 = vadd.f32 %v199, %v907
    %v916 = vadd.f32 %v201, %v908
    %v917 = vadd.f32 %v240, %v909
    %v918 = vadd.f32 %v242, %v910
    %v919 = vxor.u32 %v915, 2147483648
    %v920 = vxor.u32 %v916, 2147483648
    %v921 = vxor.u32 %v917, 2147483648
    %v922 = vmul.f32 %v919, 1.442695
    %v923 = vpow.pop %v922
    %v924 = vmul.f32 %v920, 1.442695
    %v925 = vpow.pop %v924
    %v926 = vmul.f32 %v921, 1.442695
    %v927 = vpow.pop %v926
    %v928 = vadd.f32 %v923, 1.0
    %v929 = vadd.f32 %v925, 1.0
    %v930 = vadd.f32 %v927, 1.0
    %v931 = vrcp.pop %v928
    %v932 = vmul.f32 1.0, %v931
    %v933 = vrcp.pop %v929
    %v934 = vmul.f32 1.0, %v933
    %v935 = vrcp.pop %v930
    %v936 = vmul.f32 1.0, %v935
    %v937 = vtanh.pop %v918
    %v939 = vrot.slane %v763, 7
    %v941 = vmul.f32 %v934, %v939
    %v942 = vmul.f32 %v932, %v937
    %v943 = vadd.f32 %v941, %v942
    %v944 = vtanh.pop %v943
    %v945 = vmul.f32 %v936, %v944
    %946 = vst [vmem:[#allocation3] sm:$0x8] %v945
    %v947 = vpack.c.bf16 %v945, %v945
    %v948 = vld [vmem:[%s3] sm:$0xff]
    %v949 = vld [vmem:[%s3 + $0x8] sm:$0xff]
    %v950 = vld [vmem:[%s3 + $0x10] sm:$0xff]
    %v951 = vld [vmem:[%s3 + $0x18] sm:$0xff]
    %v952 = vld [vmem:[%s3 + $0x20] sm:$0xff]
    %v953 = vld [vmem:[%s3 + $0x28] sm:$0xff]
    %v954 = vld [vmem:[%s3 + $0x30] sm:$0xff]
    %v955 = vld [vmem:[%s3 + $0x38] sm:$0xff]
    %v957 = vshrl.u32 %v947, 16
    %v959 = vrot.slane %v957, 1
    %v968 = vunpack.c.l.b16 %v948
    %v969 = vunpack.c.h.b16 %v948
    %v970 = vunpack.c.l.b16 %v949
    %v971 = vunpack.c.h.b16 %v949
    %v972 = vunpack.c.l.b16 %v950
    %v973 = vunpack.c.h.b16 %v950
    %v974 = vunpack.c.l.b16 %v951
    %v975 = vunpack.c.h.b16 %v951
    %v976 = vunpack.c.l.b16 %v952
    %v977 = vunpack.c.h.b16 %v952
    %v978 = vunpack.c.l.b16 %v953
    %v979 = vunpack.c.h.b16 %v953
    %v980 = vunpack.c.l.b16 %v954
    %v981 = vunpack.c.h.b16 %v954
    %v982 = vunpack.c.l.b16 %v955
    %v983 = vunpack.c.h.b16 %v955
    %v984 = vpack.c.b16 %v972, %v968
    %v985 = vpack.c.b16 %v973, %v969
    %v986 = vpack.c.b16 %v974, %v970
    %v987 = vpack.c.b16 %v975, %v971
    %v988 = vpack.c.b16 %v980, %v976
    %v989 = vpack.c.b16 %v981, %v977
    %v990 = vpack.c.b16 %v982, %v978
    %v991 = vpack.c.b16 %v983, %v979
    %v1001 = vsel %vm160, %v959, 0
    %1003 = vmatprep.subr.bf16.mxu0 0
    %1004 = vmatpush1.bf16.msra.mxu0 0
    %1005 = vmatprep.subr.bf16.mxu0 0
    %1006 = vmatpush1.bf16.msra.mxu0 0
    %1007 = vmatprep.subr.bf16.mxu0 0
    %1008 = vmatpush1.bf16.msra.mxu0 0
    %1009 = vmatprep.subr.bf16.mxu0 0
    %1010 = vmatpush1.bf16.msra.mxu0 0
    %1011 = vmatprep.subr.bf16.mxu0 0
    %1012 = vmatpush1.bf16.msra.mxu0 0
    %1013 = vmatprep.subr.bf16.mxu0 0
    %1014 = vmatpush1.bf16.msra.mxu0 0
    %1015 = vmatprep.subr.bf16.mxu0 %v989
    %1016 = vmatpush1.bf16.msra.mxu0 %v988
    %1017 = vmatprep.subr.bf16.mxu0 %v985
    %1018 = vmatpush1.bf16.msra.mxu0 %v984
    %1019 = vmatprep.subr.bf16.mxu0 0
    %1020 = vmatpush2.bf16.msra.mxu0 0
    %1021 = vmatprep.subr.bf16.mxu0 0
    %1022 = vmatpush2.bf16.msra.mxu0 0
    %1023 = vmatprep.subr.bf16.mxu0 0
    %1024 = vmatpush2.bf16.msra.mxu0 0
    %1025 = vmatprep.subr.bf16.mxu0 0
    %1026 = vmatpush2.bf16.msra.mxu0 0
    %1027 = vmatprep.subr.bf16.mxu0 0
    %1028 = vmatpush2.bf16.msra.mxu0 0
    %1029 = vmatprep.subr.bf16.mxu0 0
    %1030 = vmatpush2.bf16.msra.mxu0 0
    %1031 = vmatprep.subr.bf16.mxu0 0
    %1032 = vmatpush2.bf16.msra.mxu0 0
    %1033 = vmatprep.subr.bf16.mxu0 0
    %1034 = vmatpush2.bf16.msra.mxu0 0
    %1035 = vmatprep.mubr.bf16.mxu0 0
    %1036 = vmatmul.mubr.bf16.gmra.mxu0 %v1001
    %v1037 = vpop.f32.mrf.mxu0
    %v1038 = vadd.f32 0.0, %v1037
    %v1039 = vpop.f32.mrf.mxu0
    %v1040 = vadd.f32 0.0, %v1039
    %v1041 = vpop.f32.mrf.mxu0
    %v1042 = vpop.f32.mrf.mxu0
    %1043 = vdwg.mxu0
    %1044 = vmatprep.subr.bf16.mxu0 0
    %1045 = vmatpush1.bf16.msra.mxu0 0
    %1046 = vmatprep.subr.bf16.mxu0 0
    %1047 = vmatpush1.bf16.msra.mxu0 0
    %1048 = vmatprep.subr.bf16.mxu0 0
    %1049 = vmatpush1.bf16.msra.mxu0 0
    %1050 = vmatprep.subr.bf16.mxu0 0
    %1051 = vmatpush1.bf16.msra.mxu0 0
    %1052 = vmatprep.subr.bf16.mxu0 0
    %1053 = vmatpush1.bf16.msra.mxu0 0
    %1054 = vmatprep.subr.bf16.mxu0 0
    %1055 = vmatpush1.bf16.msra.mxu0 0
    %1056 = vmatprep.subr.bf16.mxu0 %v991
    %1057 = vmatpush1.bf16.msra.mxu0 %v990
    %1058 = vmatprep.subr.bf16.mxu0 %v987
    %1059 = vmatpush1.bf16.msra.mxu0 %v986
    %1060 = vmatprep.subr.bf16.mxu0 0
    %1061 = vmatpush2.bf16.msra.mxu0 0
    %1062 = vmatprep.subr.bf16.mxu0 0
    %1063 = vmatpush2.bf16.msra.mxu0 0
    %1064 = vmatprep.subr.bf16.mxu0 0
    %1065 = vmatpush2.bf16.msra.mxu0 0
    %1066 = vmatprep.subr.bf16.mxu0 0
    %1067 = vmatpush2.bf16.msra.mxu0 0
    %1068 = vmatprep.subr.bf16.mxu0 0
    %1069 = vmatpush2.bf16.msra.mxu0 0
    %1070 = vmatprep.subr.bf16.mxu0 0
    %1071 = vmatpush2.bf16.msra.mxu0 0
    %1072 = vmatprep.subr.bf16.mxu0 0
    %1073 = vmatpush2.bf16.msra.mxu0 0
    %1074 = vmatprep.subr.bf16.mxu0 0
    %1075 = vmatpush2.bf16.msra.mxu0 0
    %1076 = vmatprep.mubr.bf16.mxu0 0
    %1077 = vmatmul.mubr.bf16.gmra.mxu0 %v1001
    %v1078 = vpop.f32.mrf.mxu0
    %v1079 = vadd.f32 0.0, %v1078
    %v1080 = vpop.f32.mrf.mxu0
    %v1081 = vadd.f32 0.0, %v1080
    %v1082 = vpop.f32.mrf.mxu0
    %v1083 = vpop.f32.mrf.mxu0
    %1084 = vdwg.mxu0
    %v1089 = vrot.slane %v1038, 4
    %v1090 = vrot.slane %v1040, 4
    %v1091 = vrot.slane %v1079, 4
    %v1092 = vrot.slane %v1081, 4
    %v1097 = vadd.f32 %v199, %v1089
    %v1098 = vadd.f32 %v201, %v1090
    %v1099 = vadd.f32 %v240, %v1091
    %v1100 = vadd.f32 %v242, %v1092
    %v1101 = vxor.u32 %v1097, 2147483648
    %v1102 = vxor.u32 %v1098, 2147483648
    %v1103 = vxor.u32 %v1099, 2147483648
    %v1104 = vmul.f32 %v1101, 1.442695
    %v1105 = vpow.pop %v1104
    %v1106 = vmul.f32 %v1102, 1.442695
    %v1107 = vpow.pop %v1106
    %v1108 = vmul.f32 %v1103, 1.442695
    %v1109 = vpow.pop %v1108
    %v1110 = vadd.f32 %v1105, 1.0
    %v1111 = vadd.f32 %v1107, 1.0
    %v1112 = vadd.f32 %v1109, 1.0
    %v1113 = vrcp.pop %v1110
    %v1114 = vmul.f32 1.0, %v1113
    %v1115 = vrcp.pop %v1111
    %v1116 = vmul.f32 1.0, %v1115
    %v1117 = vrcp.pop %v1112
    %v1118 = vmul.f32 1.0, %v1117
    %v1119 = vtanh.pop %v1100
    %v1121 = vrot.slane %v943, 7
    %v1123 = vmul.f32 %v1116, %v1121
    %v1124 = vmul.f32 %v1114, %v1119
    %v1125 = vadd.f32 %v1123, %v1124
    %v1126 = vtanh.pop %v1125
    %v1127 = vmul.f32 %v1118, %v1126
    %1128 = vst [vmem:[#allocation3] sm:$0x10] %v1127
    %v1129 = vpack.c.bf16 %v1127, %v1127
    %v1130 = vld [vmem:[%s3] sm:$0xff]
    %v1131 = vld [vmem:[%s3 + $0x8] sm:$0xff]
    %v1132 = vld [vmem:[%s3 + $0x10] sm:$0xff]
    %v1133 = vld [vmem:[%s3 + $0x18] sm:$0xff]
    %v1134 = vld [vmem:[%s3 + $0x20] sm:$0xff]
    %v1135 = vld [vmem:[%s3 + $0x28] sm:$0xff]
    %v1136 = vld [vmem:[%s3 + $0x30] sm:$0xff]
    %v1137 = vld [vmem:[%s3 + $0x38] sm:$0xff]
    %v1139 = vrot.slane %v1129, 2
    %v1148 = vunpack.c.l.b16 %v1130
    %v1149 = vunpack.c.h.b16 %v1130
    %v1150 = vunpack.c.l.b16 %v1131
    %v1151 = vunpack.c.h.b16 %v1131
    %v1152 = vunpack.c.l.b16 %v1132
    %v1153 = vunpack.c.h.b16 %v1132
    %v1154 = vunpack.c.l.b16 %v1133
    %v1155 = vunpack.c.h.b16 %v1133
    %v1156 = vunpack.c.l.b16 %v1134
    %v1157 = vunpack.c.h.b16 %v1134
    %v1158 = vunpack.c.l.b16 %v1135
    %v1159 = vunpack.c.h.b16 %v1135
    %v1160 = vunpack.c.l.b16 %v1136
    %v1161 = vunpack.c.h.b16 %v1136
    %v1162 = vunpack.c.l.b16 %v1137
    %v1163 = vunpack.c.h.b16 %v1137
    %v1164 = vpack.c.b16 %v1152, %v1148
    %v1165 = vpack.c.b16 %v1153, %v1149
    %v1166 = vpack.c.b16 %v1154, %v1150
    %v1167 = vpack.c.b16 %v1155, %v1151
    %v1168 = vpack.c.b16 %v1160, %v1156
    %v1169 = vpack.c.b16 %v1161, %v1157
    %v1170 = vpack.c.b16 %v1162, %v1158
    %v1171 = vpack.c.b16 %v1163, %v1159
    %v1181 = vsel %vm160, %v1139, 0
    %1183 = vmatprep.subr.bf16.mxu0 0
    %1184 = vmatpush1.bf16.msra.mxu0 0
    %1185 = vmatprep.subr.bf16.mxu0 0
    %1186 = vmatpush1.bf16.msra.mxu0 0
    %1187 = vmatprep.subr.bf16.mxu0 0
    %1188 = vmatpush1.bf16.msra.mxu0 0
    %1189 = vmatprep.subr.bf16.mxu0 0
    %1190 = vmatpush1.bf16.msra.mxu0 0
    %1191 = vmatprep.subr.bf16.mxu0 0
    %1192 = vmatpush1.bf16.msra.mxu0 0
    %1193 = vmatprep.subr.bf16.mxu0 0
    %1194 = vmatpush1.bf16.msra.mxu0 0
    %1195 = vmatprep.subr.bf16.mxu0 %v1169
    %1196 = vmatpush1.bf16.msra.mxu0 %v1168
    %1197 = vmatprep.subr.bf16.mxu0 %v1165
    %1198 = vmatpush1.bf16.msra.mxu0 %v1164
    %1199 = vmatprep.subr.bf16.mxu0 0
    %1200 = vmatpush2.bf16.msra.mxu0 0
    %1201 = vmatprep.subr.bf16.mxu0 0
    %1202 = vmatpush2.bf16.msra.mxu0 0
    %1203 = vmatprep.subr.bf16.mxu0 0
    %1204 = vmatpush2.bf16.msra.mxu0 0
    %1205 = vmatprep.subr.bf16.mxu0 0
    %1206 = vmatpush2.bf16.msra.mxu0 0
    %1207 = vmatprep.subr.bf16.mxu0 0
    %1208 = vmatpush2.bf16.msra.mxu0 0
    %1209 = vmatprep.subr.bf16.mxu0 0
    %1210 = vmatpush2.bf16.msra.mxu0 0
    %1211 = vmatprep.subr.bf16.mxu0 0
    %1212 = vmatpush2.bf16.msra.mxu0 0
    %1213 = vmatprep.subr.bf16.mxu0 0
    %1214 = vmatpush2.bf16.msra.mxu0 0
    %1215 = vmatprep.mubr.bf16.mxu0 0
    %1216 = vmatmul.mubr.bf16.gmra.mxu0 %v1181
    %v1217 = vpop.f32.mrf.mxu0
    %v1218 = vadd.f32 0.0, %v1217
    %v1219 = vpop.f32.mrf.mxu0
    %v1220 = vadd.f32 0.0, %v1219
    %v1221 = vpop.f32.mrf.mxu0
    %v1222 = vpop.f32.mrf.mxu0
    %1223 = vdwg.mxu0
    %1224 = vmatprep.subr.bf16.mxu0 0
    %1225 = vmatpush1.bf16.msra.mxu0 0
    %1226 = vmatprep.subr.bf16.mxu0 0
    %1227 = vmatpush1.bf16.msra.mxu0 0
    %1228 = vmatprep.subr.bf16.mxu0 0
    %1229 = vmatpush1.bf16.msra.mxu0 0
    %1230 = vmatprep.subr.bf16.mxu0 0
    %1231 = vmatpush1.bf16.msra.mxu0 0
    %1232 = vmatprep.subr.bf16.mxu0 0
    %1233 = vmatpush1.bf16.msra.mxu0 0
    %1234 = vmatprep.subr.bf16.mxu0 0
    %1235 = vmatpush1.bf16.msra.mxu0 0
    %1236 = vmatprep.subr.bf16.mxu0 %v1171
    %1237 = vmatpush1.bf16.msra.mxu0 %v1170
    %1238 = vmatprep.subr.bf16.mxu0 %v1167
    %1239 = vmatpush1.bf16.msra.mxu0 %v1166
    %1240 = vmatprep.subr.bf16.mxu0 0
    %1241 = vmatpush2.bf16.msra.mxu0 0
    %1242 = vmatprep.subr.bf16.mxu0 0
    %1243 = vmatpush2.bf16.msra.mxu0 0
    %1244 = vmatprep.subr.bf16.mxu0 0
    %1245 = vmatpush2.bf16.msra.mxu0 0
    %1246 = vmatprep.subr.bf16.mxu0 0
    %1247 = vmatpush2.bf16.msra.mxu0 0
    %1248 = vmatprep.subr.bf16.mxu0 0
    %1249 = vmatpush2.bf16.msra.mxu0 0
    %1250 = vmatprep.subr.bf16.mxu0 0
    %1251 = vmatpush2.bf16.msra.mxu0 0
    %1252 = vmatprep.subr.bf16.mxu0 0
    %1253 = vmatpush2.bf16.msra.mxu0 0
    %1254 = vmatprep.subr.bf16.mxu0 0
    %1255 = vmatpush2.bf16.msra.mxu0 0
    %1256 = vmatprep.mubr.bf16.mxu0 0
    %1257 = vmatmul.mubr.bf16.gmra.mxu0 %v1181
    %v1258 = vpop.f32.mrf.mxu0
    %v1259 = vadd.f32 0.0, %v1258
    %v1260 = vpop.f32.mrf.mxu0
    %v1261 = vadd.f32 0.0, %v1260
    %v1262 = vpop.f32.mrf.mxu0
    %v1263 = vpop.f32.mrf.mxu0
    %1264 = vdwg.mxu0
    %v1269 = vrot.slane %v1218, 3
    %v1270 = vrot.slane %v1220, 3
    %v1271 = vrot.slane %v1259, 3
    %v1272 = vrot.slane %v1261, 3
    %v1277 = vadd.f32 %v199, %v1269
    %v1278 = vadd.f32 %v201, %v1270
    %v1279 = vadd.f32 %v240, %v1271
    %v1280 = vadd.f32 %v242, %v1272
    %v1281 = vxor.u32 %v1277, 2147483648
    %v1282 = vxor.u32 %v1278, 2147483648
    %v1283 = vxor.u32 %v1279, 2147483648
    %v1284 = vmul.f32 %v1281, 1.442695
    %v1285 = vpow.pop %v1284
    %v1286 = vmul.f32 %v1282, 1.442695
    %v1287 = vpow.pop %v1286
    %v1288 = vmul.f32 %v1283, 1.442695
    %v1289 = vpow.pop %v1288
    %v1290 = vadd.f32 %v1285, 1.0
    %v1291 = vadd.f32 %v1287, 1.0
    %v1292 = vadd.f32 %v1289, 1.0
    %v1293 = vrcp.pop %v1290
    %v1294 = vmul.f32 1.0, %v1293
    %v1295 = vrcp.pop %v1291
    %v1296 = vmul.f32 1.0, %v1295
    %v1297 = vrcp.pop %v1292
    %v1298 = vmul.f32 1.0, %v1297
    %v1299 = vtanh.pop %v1280
    %v1301 = vrot.slane %v1125, 7
    %v1303 = vmul.f32 %v1296, %v1301
    %v1304 = vmul.f32 %v1294, %v1299
    %v1305 = vadd.f32 %v1303, %v1304
    %v1306 = vtanh.pop %v1305
    %v1307 = vmul.f32 %v1298, %v1306
    %1308 = vst [vmem:[#allocation3] sm:$0x20] %v1307
    %v1309 = vpack.c.bf16 %v1307, %v1307
    %v1310 = vld [vmem:[%s3] sm:$0xff]
    %v1311 = vld [vmem:[%s3 + $0x8] sm:$0xff]
    %v1312 = vld [vmem:[%s3 + $0x10] sm:$0xff]
    %v1313 = vld [vmem:[%s3 + $0x18] sm:$0xff]
    %v1314 = vld [vmem:[%s3 + $0x20] sm:$0xff]
    %v1315 = vld [vmem:[%s3 + $0x28] sm:$0xff]
    %v1316 = vld [vmem:[%s3 + $0x30] sm:$0xff]
    %v1317 = vld [vmem:[%s3 + $0x38] sm:$0xff]
    %v1319 = vshrl.u32 %v1309, 16
    %v1321 = vrot.slane %v1319, 2
    %v1330 = vunpack.c.l.b16 %v1310
    %v1331 = vunpack.c.h.b16 %v1310
    %v1332 = vunpack.c.l.b16 %v1311
    %v1333 = vunpack.c.h.b16 %v1311
    %v1334 = vunpack.c.l.b16 %v1312
    %v1335 = vunpack.c.h.b16 %v1312
    %v1336 = vunpack.c.l.b16 %v1313
    %v1337 = vunpack.c.h.b16 %v1313
    %v1338 = vunpack.c.l.b16 %v1314
    %v1339 = vunpack.c.h.b16 %v1314
    %v1340 = vunpack.c.l.b16 %v1315
    %v1341 = vunpack.c.h.b16 %v1315
    %v1342 = vunpack.c.l.b16 %v1316
    %v1343 = vunpack.c.h.b16 %v1316
    %v1344 = vunpack.c.l.b16 %v1317
    %v1345 = vunpack.c.h.b16 %v1317
    %v1346 = vpack.c.b16 %v1334, %v1330
    %v1347 = vpack.c.b16 %v1335, %v1331
    %v1348 = vpack.c.b16 %v1336, %v1332
    %v1349 = vpack.c.b16 %v1337, %v1333
    %v1350 = vpack.c.b16 %v1342, %v1338
    %v1351 = vpack.c.b16 %v1343, %v1339
    %v1352 = vpack.c.b16 %v1344, %v1340
    %v1353 = vpack.c.b16 %v1345, %v1341
    %v1363 = vsel %vm160, %v1321, 0
    %1365 = vmatprep.subr.bf16.mxu0 0
    %1366 = vmatpush1.bf16.msra.mxu0 0
    %1367 = vmatprep.subr.bf16.mxu0 0
    %1368 = vmatpush1.bf16.msra.mxu0 0
    %1369 = vmatprep.subr.bf16.mxu0 0
    %1370 = vmatpush1.bf16.msra.mxu0 0
    %1371 = vmatprep.subr.bf16.mxu0 0
    %1372 = vmatpush1.bf16.msra.mxu0 0
    %1373 = vmatprep.subr.bf16.mxu0 0
    %1374 = vmatpush1.bf16.msra.mxu0 0
    %1375 = vmatprep.subr.bf16.mxu0 0
    %1376 = vmatpush1.bf16.msra.mxu0 0
    %1377 = vmatprep.subr.bf16.mxu0 %v1351
    %1378 = vmatpush1.bf16.msra.mxu0 %v1350
    %1379 = vmatprep.subr.bf16.mxu0 %v1347
    %1380 = vmatpush1.bf16.msra.mxu0 %v1346
    %1381 = vmatprep.subr.bf16.mxu0 0
    %1382 = vmatpush2.bf16.msra.mxu0 0
    %1383 = vmatprep.subr.bf16.mxu0 0
    %1384 = vmatpush2.bf16.msra.mxu0 0
    %1385 = vmatprep.subr.bf16.mxu0 0
    %1386 = vmatpush2.bf16.msra.mxu0 0
    %1387 = vmatprep.subr.bf16.mxu0 0
    %1388 = vmatpush2.bf16.msra.mxu0 0
    %1389 = vmatprep.subr.bf16.mxu0 0
    %1390 = vmatpush2.bf16.msra.mxu0 0
    %1391 = vmatprep.subr.bf16.mxu0 0
    %1392 = vmatpush2.bf16.msra.mxu0 0
    %1393 = vmatprep.subr.bf16.mxu0 0
    %1394 = vmatpush2.bf16.msra.mxu0 0
    %1395 = vmatprep.subr.bf16.mxu0 0
    %1396 = vmatpush2.bf16.msra.mxu0 0
    %1397 = vmatprep.mubr.bf16.mxu0 0
    %1398 = vmatmul.mubr.bf16.gmra.mxu0 %v1363
    %v1399 = vpop.f32.mrf.mxu0
    %v1400 = vadd.f32 0.0, %v1399
    %v1401 = vpop.f32.mrf.mxu0
    %v1402 = vadd.f32 0.0, %v1401
    %v1403 = vpop.f32.mrf.mxu0
    %v1404 = vpop.f32.mrf.mxu0
    %1405 = vdwg.mxu0
    %1406 = vmatprep.subr.bf16.mxu0 0
    %1407 = vmatpush1.bf16.msra.mxu0 0
    %1408 = vmatprep.subr.bf16.mxu0 0
    %1409 = vmatpush1.bf16.msra.mxu0 0
    %1410 = vmatprep.subr.bf16.mxu0 0
    %1411 = vmatpush1.bf16.msra.mxu0 0
    %1412 = vmatprep.subr.bf16.mxu0 0
    %1413 = vmatpush1.bf16.msra.mxu0 0
    %1414 = vmatprep.subr.bf16.mxu0 0
    %1415 = vmatpush1.bf16.msra.mxu0 0
    %1416 = vmatprep.subr.bf16.mxu0 0
    %1417 = vmatpush1.bf16.msra.mxu0 0
    %1418 = vmatprep.subr.bf16.mxu0 %v1353
    %1419 = vmatpush1.bf16.msra.mxu0 %v1352
    %1420 = vmatprep.subr.bf16.mxu0 %v1349
    %1421 = vmatpush1.bf16.msra.mxu0 %v1348
    %1422 = vmatprep.subr.bf16.mxu0 0
    %1423 = vmatpush2.bf16.msra.mxu0 0
    %1424 = vmatprep.subr.bf16.mxu0 0
    %1425 = vmatpush2.bf16.msra.mxu0 0
    %1426 = vmatprep.subr.bf16.mxu0 0
    %1427 = vmatpush2.bf16.msra.mxu0 0
    %1428 = vmatprep.subr.bf16.mxu0 0
    %1429 = vmatpush2.bf16.msra.mxu0 0
    %1430 = vmatprep.subr.bf16.mxu0 0
    %1431 = vmatpush2.bf16.msra.mxu0 0
    %1432 = vmatprep.subr.bf16.mxu0 0
    %1433 = vmatpush2.bf16.msra.mxu0 0
    %1434 = vmatprep.subr.bf16.mxu0 0
    %1435 = vmatpush2.bf16.msra.mxu0 0
    %1436 = vmatprep.subr.bf16.mxu0 0
    %1437 = vmatpush2.bf16.msra.mxu0 0
    %1438 = vmatprep.mubr.bf16.mxu0 0
    %1439 = vmatmul.mubr.bf16.gmra.mxu0 %v1363
    %v1440 = vpop.f32.mrf.mxu0
    %v1441 = vadd.f32 0.0, %v1440
    %v1442 = vpop.f32.mrf.mxu0
    %v1443 = vadd.f32 0.0, %v1442
    %v1444 = vpop.f32.mrf.mxu0
    %v1445 = vpop.f32.mrf.mxu0
    %1446 = vdwg.mxu0
    %v1451 = vrot.slane %v1400, 2
    %v1452 = vrot.slane %v1402, 2
    %v1453 = vrot.slane %v1441, 2
    %v1454 = vrot.slane %v1443, 2
    %v1459 = vadd.f32 %v199, %v1451
    %v1460 = vadd.f32 %v201, %v1452
    %v1461 = vadd.f32 %v240, %v1453
    %v1462 = vadd.f32 %v242, %v1454
    %v1463 = vxor.u32 %v1459, 2147483648
    %v1464 = vxor.u32 %v1460, 2147483648
    %v1465 = vxor.u32 %v1461, 2147483648
    %v1466 = vmul.f32 %v1463, 1.442695
    %v1467 = vpow.pop %v1466
    %v1468 = vmul.f32 %v1464, 1.442695
    %v1469 = vpow.pop %v1468
    %v1470 = vmul.f32 %v1465, 1.442695
    %v1471 = vpow.pop %v1470
    %v1472 = vadd.f32 %v1467, 1.0
    %v1473 = vadd.f32 %v1469, 1.0
    %v1474 = vadd.f32 %v1471, 1.0
    %v1475 = vrcp.pop %v1472
    %v1476 = vmul.f32 1.0, %v1475
    %v1477 = vrcp.pop %v1473
    %v1478 = vmul.f32 1.0, %v1477
    %v1479 = vrcp.pop %v1474
    %v1480 = vmul.f32 1.0, %v1479
    %v1481 = vtanh.pop %v1462
    %v1483 = vrot.slane %v1305, 7
    %v1485 = vmul.f32 %v1478, %v1483
    %v1486 = vmul.f32 %v1476, %v1481
    %v1487 = vadd.f32 %v1485, %v1486
    %v1488 = vtanh.pop %v1487
    %v1489 = vmul.f32 %v1480, %v1488
    %1490 = vst [vmem:[#allocation3] sm:$0x40] %v1489
    %v1491 = vpack.c.bf16 %v1489, %v1489
    %v1492 = vld [vmem:[%s3] sm:$0xff]
    %v1493 = vld [vmem:[%s3 + $0x8] sm:$0xff]
    %v1494 = vld [vmem:[%s3 + $0x10] sm:$0xff]
    %v1495 = vld [vmem:[%s3 + $0x18] sm:$0xff]
    %v1496 = vld [vmem:[%s3 + $0x20] sm:$0xff]
    %v1497 = vld [vmem:[%s3 + $0x28] sm:$0xff]
    %v1498 = vld [vmem:[%s3 + $0x30] sm:$0xff]
    %v1499 = vld [vmem:[%s3 + $0x38] sm:$0xff]
    %v1501 = vrot.slane %v1491, 3
    %v1510 = vunpack.c.l.b16 %v1492
    %v1511 = vunpack.c.h.b16 %v1492
    %v1512 = vunpack.c.l.b16 %v1493
    %v1513 = vunpack.c.h.b16 %v1493
    %v1514 = vunpack.c.l.b16 %v1494
    %v1515 = vunpack.c.h.b16 %v1494
    %v1516 = vunpack.c.l.b16 %v1495
    %v1517 = vunpack.c.h.b16 %v1495
    %v1518 = vunpack.c.l.b16 %v1496
    %v1519 = vunpack.c.h.b16 %v1496
    %v1520 = vunpack.c.l.b16 %v1497
    %v1521 = vunpack.c.h.b16 %v1497
    %v1522 = vunpack.c.l.b16 %v1498
    %v1523 = vunpack.c.h.b16 %v1498
    %v1524 = vunpack.c.l.b16 %v1499
    %v1525 = vunpack.c.h.b16 %v1499
    %v1526 = vpack.c.b16 %v1514, %v1510
    %v1527 = vpack.c.b16 %v1515, %v1511
    %v1528 = vpack.c.b16 %v1516, %v1512
    %v1529 = vpack.c.b16 %v1517, %v1513
    %v1530 = vpack.c.b16 %v1522, %v1518
    %v1531 = vpack.c.b16 %v1523, %v1519
    %v1532 = vpack.c.b16 %v1524, %v1520
    %v1533 = vpack.c.b16 %v1525, %v1521
    %v1543 = vsel %vm160, %v1501, 0
    %1545 = vmatprep.subr.bf16.mxu0 0
    %1546 = vmatpush1.bf16.msra.mxu0 0
    %1547 = vmatprep.subr.bf16.mxu0 0
    %1548 = vmatpush1.bf16.msra.mxu0 0
    %1549 = vmatprep.subr.bf16.mxu0 0
    %1550 = vmatpush1.bf16.msra.mxu0 0
    %1551 = vmatprep.subr.bf16.mxu0 0
    %1552 = vmatpush1.bf16.msra.mxu0 0
    %1553 = vmatprep.subr.bf16.mxu0 0
    %1554 = vmatpush1.bf16.msra.mxu0 0
    %1555 = vmatprep.subr.bf16.mxu0 0
    %1556 = vmatpush1.bf16.msra.mxu0 0
    %1557 = vmatprep.subr.bf16.mxu0 %v1531
    %1558 = vmatpush1.bf16.msra.mxu0 %v1530
    %1559 = vmatprep.subr.bf16.mxu0 %v1527
    %1560 = vmatpush1.bf16.msra.mxu0 %v1526
    %1561 = vmatprep.subr.bf16.mxu0 0
    %1562 = vmatpush2.bf16.msra.mxu0 0
    %1563 = vmatprep.subr.bf16.mxu0 0
    %1564 = vmatpush2.bf16.msra.mxu0 0
    %1565 = vmatprep.subr.bf16.mxu0 0
    %1566 = vmatpush2.bf16.msra.mxu0 0
    %1567 = vmatprep.subr.bf16.mxu0 0
    %1568 = vmatpush2.bf16.msra.mxu0 0
    %1569 = vmatprep.subr.bf16.mxu0 0
    %1570 = vmatpush2.bf16.msra.mxu0 0
    %1571 = vmatprep.subr.bf16.mxu0 0
    %1572 = vmatpush2.bf16.msra.mxu0 0
    %1573 = vmatprep.subr.bf16.mxu0 0
    %1574 = vmatpush2.bf16.msra.mxu0 0
    %1575 = vmatprep.subr.bf16.mxu0 0
    %1576 = vmatpush2.bf16.msra.mxu0 0
    %1577 = vmatprep.mubr.bf16.mxu0 0
    %1578 = vmatmul.mubr.bf16.gmra.mxu0 %v1543
    %v1579 = vpop.f32.mrf.mxu0
    %v1580 = vadd.f32 0.0, %v1579
    %v1581 = vpop.f32.mrf.mxu0
    %v1582 = vadd.f32 0.0, %v1581
    %v1583 = vpop.f32.mrf.mxu0
    %v1584 = vpop.f32.mrf.mxu0
    %1585 = vdwg.mxu0
    %1586 = vmatprep.subr.bf16.mxu0 0
    %1587 = vmatpush1.bf16.msra.mxu0 0
    %1588 = vmatprep.subr.bf16.mxu0 0
    %1589 = vmatpush1.bf16.msra.mxu0 0
    %1590 = vmatprep.subr.bf16.mxu0 0
    %1591 = vmatpush1.bf16.msra.mxu0 0
    %1592 = vmatprep.subr.bf16.mxu0 0
    %1593 = vmatpush1.bf16.msra.mxu0 0
    %1594 = vmatprep.subr.bf16.mxu0 0
    %1595 = vmatpush1.bf16.msra.mxu0 0
    %1596 = vmatprep.subr.bf16.mxu0 0
    %1597 = vmatpush1.bf16.msra.mxu0 0
    %1598 = vmatprep.subr.bf16.mxu0 %v1533
    %1599 = vmatpush1.bf16.msra.mxu0 %v1532
    %1600 = vmatprep.subr.bf16.mxu0 %v1529
    %1601 = vmatpush1.bf16.msra.mxu0 %v1528
    %1602 = vmatprep.subr.bf16.mxu0 0
    %1603 = vmatpush2.bf16.msra.mxu0 0
    %1604 = vmatprep.subr.bf16.mxu0 0
    %1605 = vmatpush2.bf16.msra.mxu0 0
    %1606 = vmatprep.subr.bf16.mxu0 0
    %1607 = vmatpush2.bf16.msra.mxu0 0
    %1608 = vmatprep.subr.bf16.mxu0 0
    %1609 = vmatpush2.bf16.msra.mxu0 0
    %1610 = vmatprep.subr.bf16.mxu0 0
    %1611 = vmatpush2.bf16.msra.mxu0 0
    %1612 = vmatprep.subr.bf16.mxu0 0
    %1613 = vmatpush2.bf16.msra.mxu0 0
    %1614 = vmatprep.subr.bf16.mxu0 0
    %1615 = vmatpush2.bf16.msra.mxu0 0
    %1616 = vmatprep.subr.bf16.mxu0 0
    %1617 = vmatpush2.bf16.msra.mxu0 0
    %1618 = vmatprep.mubr.bf16.mxu0 0
    %1619 = vmatmul.mubr.bf16.gmra.mxu0 %v1543
    %v1620 = vpop.f32.mrf.mxu0
    %v1621 = vadd.f32 0.0, %v1620
    %v1622 = vpop.f32.mrf.mxu0
    %v1623 = vadd.f32 0.0, %v1622
    %v1624 = vpop.f32.mrf.mxu0
    %v1625 = vpop.f32.mrf.mxu0
    %1626 = vdwg.mxu0
    %v1631 = vrot.slane %v1580, 1
    %v1632 = vrot.slane %v1582, 1
    %v1633 = vrot.slane %v1621, 1
    %v1634 = vrot.slane %v1623, 1
    %v1639 = vadd.f32 %v199, %v1631
    %v1640 = vadd.f32 %v201, %v1632
    %v1641 = vadd.f32 %v240, %v1633
    %v1642 = vadd.f32 %v242, %v1634
    %v1643 = vxor.u32 %v1639, 2147483648
    %v1644 = vxor.u32 %v1640, 2147483648
    %v1645 = vxor.u32 %v1641, 2147483648
    %v1646 = vmul.f32 %v1643, 1.442695
    %v1647 = vpow.pop %v1646
    %v1648 = vmul.f32 %v1644, 1.442695
    %v1649 = vpow.pop %v1648
    %v1650 = vmul.f32 %v1645, 1.442695
    %v1651 = vpow.pop %v1650
    %v1652 = vadd.f32 %v1647, 1.0
    %v1653 = vadd.f32 %v1649, 1.0
    %v1654 = vadd.f32 %v1651, 1.0
    %v1655 = vrcp.pop %v1652
    %v1656 = vmul.f32 1.0, %v1655
    %v1657 = vrcp.pop %v1653
    %v1658 = vmul.f32 1.0, %v1657
    %v1659 = vrcp.pop %v1654
    %v1660 = vmul.f32 1.0, %v1659
    %v1661 = vtanh.pop %v1642
    %v1663 = vrot.slane %v1487, 7
    %v1665 = vmul.f32 %v1658, %v1663
    %v1666 = vmul.f32 %v1656, %v1661
    %v1667 = vadd.f32 %v1665, %v1666
    %v1668 = vtanh.pop %v1667
    %v1669 = vmul.f32 %v1660, %v1668
    %1670 = vst [vmem:[#allocation3] sm:$0x80] %v1669
    %v1671 = vld [vmem:[#allocation3] sm:$0xff]
    %v1672 = vld [vmem:[%s5] sm:$0xff]
    %v1673 = vld [vmem:[%s5 + $0x8] sm:$0xff]
    %v1674 = vld [vmem:[%s5 + $0x10] sm:$0xff]
    %v1675 = vld [vmem:[%s5 + $0x18] sm:$0xff]
    %v1676 = vld [vmem:[%s5 + $0x20] sm:$0xff]
    %v1677 = vld [vmem:[%s5 + $0x28] sm:$0xff]
    %v1678 = vld [vmem:[%s5 + $0x30] sm:$0xff]
    %v1679 = vld [vmem:[%s5 + $0x38] sm:$0xff]
    %v1680 = vld [vmem:[%s5 + $0x40] sm:$0xff]
    %v1681 = vld [vmem:[%s5 + $0x48] sm:$0xff]
    %v1682 = vld [vmem:[%s5 + $0x50] sm:$0xff]
    %v1683 = vld [vmem:[%s5 + $0x58] sm:$0xff]
    %v1684 = vld [vmem:[%s5 + $0x60] sm:$0xff]
    %v1685 = vld [vmem:[%s5 + $0x68] sm:$0xff]
    %v1686 = vld [vmem:[%s5 + $0x70] sm:$0xff]
    %v1687 = vld [vmem:[%s5 + $0x78] sm:$0xff]
    %v1688 = vld [vmem:[%s6] sm:$0x1]
    %v1690 = vlaneseq
    %v1691 = vshrl.u32 %v1690, 7
    %v1692 = vsub.s32 0, %v1691
    %v1693 = vrot.slane %v1688, %v1692
    %1695 = vmatprep.subr.mxu0 0.0
    %1696 = vmatpush1.msra.mxu0 %v1687
    %1697 = vmatprep.subr.mxu0 0.0
    %1698 = vmatpush1.msra.mxu0 %v1686
    %1699 = vmatprep.subr.mxu0 0.0
    %1700 = vmatpush1.msra.mxu0 %v1685
    %1701 = vmatprep.subr.mxu0 0.0
    %1702 = vmatpush1.msra.mxu0 %v1684
    %1703 = vmatprep.subr.mxu0 0.0
    %1704 = vmatpush1.msra.mxu0 %v1683
    %1705 = vmatprep.subr.mxu0 0.0
    %1706 = vmatpush1.msra.mxu0 %v1682
    %1707 = vmatprep.subr.mxu0 0.0
    %1708 = vmatpush1.msra.mxu0 %v1681
    %1709 = vmatprep.subr.mxu0 0.0
    %1710 = vmatpush1.msra.mxu0 %v1680
    %1711 = vmatprep.subr.mxu0 0.0
    %1712 = vmatpush1.msra.mxu0 %v1679
    %1713 = vmatprep.subr.mxu0 0.0
    %1714 = vmatpush1.msra.mxu0 %v1678
    %1715 = vmatprep.subr.mxu0 0.0
    %1716 = vmatpush1.msra.mxu0 %v1677
    %1717 = vmatprep.subr.mxu0 0.0
    %1718 = vmatpush1.msra.mxu0 %v1676
    %1719 = vmatprep.subr.mxu0 0.0
    %1720 = vmatpush1.msra.mxu0 %v1675
    %1721 = vmatprep.subr.mxu0 0.0
    %1722 = vmatpush1.msra.mxu0 %v1674
    %1723 = vmatprep.subr.mxu0 0.0
    %1724 = vmatpush1.msra.mxu0 %v1673
    %1725 = vmatprep.subr.mxu0 0.0
    %1726 = vmatpush1.msra.mxu0 %v1672
    %1727 = vmatprep.subr.mxu0 0.0
    %1728 = vmatpush2.msra.mxu0 0.0
    %1729 = vmatprep.subr.mxu0 0.0
    %1730 = vmatpush2.msra.mxu0 0.0
    %1731 = vmatprep.subr.mxu0 0.0
    %1732 = vmatpush2.msra.mxu0 0.0
    %1733 = vmatprep.subr.mxu0 0.0
    %1734 = vmatpush2.msra.mxu0 0.0
    %1735 = vmatprep.subr.mxu0 0.0
    %1736 = vmatpush2.msra.mxu0 0.0
    %1737 = vmatprep.subr.mxu0 0.0
    %1738 = vmatpush2.msra.mxu0 0.0
    %1739 = vmatprep.subr.mxu0 0.0
    %1740 = vmatpush2.msra.mxu0 0.0
    %1741 = vmatprep.subr.mxu0 0.0
    %1742 = vmatpush2.msra.mxu0 0.0
    %1743 = vmatprep.subr.mxu0 0.0
    %1744 = vmatpush2.msra.mxu0 0.0
    %1745 = vmatprep.subr.mxu0 0.0
    %1746 = vmatpush2.msra.mxu0 0.0
    %1747 = vmatprep.subr.mxu0 0.0
    %1748 = vmatpush2.msra.mxu0 0.0
    %1749 = vmatprep.subr.mxu0 0.0
    %1750 = vmatpush2.msra.mxu0 0.0
    %1751 = vmatprep.subr.mxu0 0.0
    %1752 = vmatpush2.msra.mxu0 0.0
    %1753 = vmatprep.subr.mxu0 0.0
    %1754 = vmatpush2.msra.mxu0 0.0
    %1755 = vmatprep.subr.mxu0 0.0
    %1756 = vmatpush2.msra.mxu0 0.0
    %1757 = vmatprep.subr.mxu0 0.0
    %1758 = vmatpush2.msra.mxu0 0.0
    %1759 = vmatprep.mubr.f32.mxu0 0.0
    %1760 = vmatmul.mubr.f32.gmra.mxu0 %v1671
    %v1761 = vpop.f32.mrf.mxu0
    %v1762 = vadd.f32 %v1693, %v1761
    %v1763 = vpop.f32.mrf.mxu0
    %1764 = vdwg.mxu0
    %vm1765 = vcmask 64512
    %v1766 = vsel %vm1765, %v1762, -inf
    %1767 = vmax.xlane.f32.xlu0 %v1766
    %v1768 = vpop.xlane.xlu0 %1767
    %v1769 = vsub.f32 %v1762, %v1768
    %v1770 = vmul.f32 %v1769, 1.442695
    %v1771 = vpow.pop %v1770
    %v1772 = vsel %vm1765, %v1771, 0.0
    %1773 = vadd.xlane.f32.xlu0 %v1772
    %v1774 = vpop.xlane.xlu0 %1773
    %v1775 = vlog2.pop %v1774
    %v1776 = vmul.f32 %v1775, 0.6931472
    %v1777 = vadd.f32 %v1768, %v1776
    %v1778 = vsub.f32 %v1762, %v1777
    %1779 = vst.msk [vmem:[#allocation9] sm:$0xff] %vm1765, %v1778
    // Predicated region
    $region38: #{lstm_tagger_forward.1} parent=1 // pred_check
      _
    $region39: #{lstm_tagger_forward.1} parent=1 // pred_check_branch
      %1781 = sbr.rel (0) target = $region41
    $region40: #{lstm_tagger_forward.1} parent=1 // pred_region
      %s1783 = ssub.s32 128, 128
      %1784 = vsyncadd [#allocation6], %s1783
      %s1786 = sshll.u32 [#allocation9], 4
      %s1787 = int_to_ptr.vmem [resolvable:$true] %s1786
      %1789 = dma.vmem_to_hbm [thread:$0]  %s1787, 128, %s7, [#allocation6]
    $region41: #{lstm_tagger_forward.1} parent=1 // pred_fallthru
      _
    // Predicated region
    $region42: #{lstm_tagger_forward.1} parent=1 // pred_check
      _
    $region43: #{lstm_tagger_forward.1} parent=1 // pred_check_branch
      %1791 = sbr.rel (0) target = $region45
    $region44: #{lstm_tagger_forward.1} parent=1 // pred_region
      %1792 = dma.done [#allocation6], 128
    $region45: #{lstm_tagger_forward.1} parent=1 // pred_fallthru
      _
    %1793 = vsyncpa [#allocation5], 1
    %1794 = vsyncpa [#allocation6], 1
    %1795 = vsyncpa [#allocation7], 1

</llo_original>
